<compile_context>
chip_gen: v7x
topology: tpu7x:2x2x1
jax: 0.10.0
libtpu: 0.0.40
codegen_flags: <defaults>
</compile_context>

<pallas_src>
import jax
import jax.numpy as jnp
from jax import lax
from jax.experimental import pallas as pl
from jax.experimental.pallas import tpu as pltpu

H = 100          # hidden_size
HP = 128         # padded hidden (lane aligned)
F = 1            # input_size
OUT = 1          # output_size


def lstm_kernel(seq_ref, wih_ref, whh_ref, b_ref, wlin_ref, blin_ref,
                h0_ref, c0_ref,
                pred_ref, h_out_ref, c_out_ref,
                xw_ref):
    seq_len = seq_ref.shape[0]

    # h-independent input projection for every timestep, one vectorized shot:
    # (T,1) * (1,4*HP) + (1,4*HP) -> (T,4*HP).  Off the serial chain.
    xw_ref[...] = seq_ref[...] * wih_ref[...] + b_ref[...]

    # Hoist loop invariants; Mosaic may keep the bf16 W_hh resident in vregs.
    whh = whh_ref[...]                                   # (HP, 4*HP) bf16
    h0 = h0_ref[...]                                     # (1, HP) f32
    c0 = c0_ref[...]                                     # (1, HP) f32

    def step(t, carry):
        h, c = carry                                     # vreg-resident state
        xw_t = xw_ref[pl.ds(t, 1), :]                    # (1, 4*HP) f32
        gates = xw_t + jnp.dot(h.astype(jnp.bfloat16), whh,
                               preferred_element_type=jnp.float32)
        # One wide tanh; i/f/o columns were pre-scaled by 0.5 at pack time so
        # sigmoid(z) == 0.5 * tanh(z/2) + 0.5 exactly.
        t_all = jnp.tanh(gates)
        i_g = 0.5 * t_all[:, 0 * HP:1 * HP] + 0.5
        f_g = 0.5 * t_all[:, 1 * HP:2 * HP] + 0.5
        g_g = t_all[:, 2 * HP:3 * HP]
        o_g = 0.5 * t_all[:, 3 * HP:4 * HP] + 0.5
        c_new = f_g * c + i_g * g_g
        h_new = o_g * jnp.tanh(c_new)
        return (h_new, c_new)

    # Bounded unroll keeps LLO scheduling visibility without exploding compile
    # time at realistic sequence lengths.
    h_fin, c_fin = lax.fori_loop(0, seq_len, step, (h0, c0),
                                 unroll=min(seq_len, 8))

    # State written exactly once (outputs aliased onto h0/c0 buffers).
    h_out_ref[...] = h_fin
    c_out_ref[...] = c_fin

    # Linear head (OUT == 1): VPU multiply + lane reduction; padded lanes of
    # both h and wlin are exactly zero so nothing leaks into the sum.
    pred_ref[...] = (jnp.sum(h_fin * wlin_ref[...], axis=-1, keepdims=True)
                     + blin_ref[...])


# Gate pre-scale: sigmoid gates (i, f, o) get 0.5; the tanh gate (g) gets 1.0.
_GATE_SCALE = jnp.array([0.5, 0.5, 1.0, 0.5], jnp.float32).reshape(4, 1)


def pack_params(wih, whh, bih, bhh, wlin, blin):
    """Pack PyTorch-layout LSTM/Linear weights once (outside the hot path)."""

    def pack_gates(w_t, in_dim, in_pad, dtype):
        # w_t: (in_dim, 4H), gate order [i|f|g|o] along columns.
        w4 = w_t.reshape(in_dim, 4, H) * _GATE_SCALE          # prescale i/f/o
        w4 = jnp.pad(w4, ((0, in_pad - in_dim), (0, 0), (0, HP - H)))
        return w4.reshape(in_pad, 4 * HP).astype(dtype)

    wih_row = pack_gates(wih.T, F, F, jnp.float32)            # (1,  4*HP) f32
    # Recurrent weights in bf16 (MXU-native); padded rows/cols stay exactly 0.
    whh_p = pack_gates(whh.T, H, HP, jnp.bfloat16)            # (HP, 4*HP) bf16

    b4 = (bih + bhh).reshape(4, H) * _GATE_SCALE
    b_p = jnp.pad(b4, ((0, 0), (0, HP - H))).reshape(1, 4 * HP).astype(jnp.float32)

    wlin_row = jnp.pad(wlin.astype(jnp.float32), ((0, 0), (0, HP - H)))  # (1, HP)
    blin_p = blin.reshape(1, OUT).astype(jnp.float32)                    # (1, 1)

    return wih_row, whh_p, b_p, wlin_row, blin_p


_VMEM = pl.BlockSpec(memory_space=pltpu.MemorySpace.VMEM)


@jax.jit
def lstm_forward(seq, h_p, c_p, wih_row, whh_p, b_p, wlin_row, blin_p):
    """One forward() call.

    seq: (T,); h_p/c_p: padded (1, HP) carried across calls.
    Returns (pred[-1] (OUT,), new h_p, new c_p)."""
    T = seq.shape[0]
    seq2d = seq.astype(jnp.float32).reshape(T, 1)

    pred_p, h_new, c_new = pl.pallas_call(
        lstm_kernel,
        out_shape=(
            jax.ShapeDtypeStruct((1, OUT), jnp.float32),
            jax.ShapeDtypeStruct((1, HP), jnp.float32),
            jax.ShapeDtypeStruct((1, HP), jnp.float32),
        ),
        in_specs=[_VMEM] * 8,
        out_specs=(_VMEM, _VMEM, _VMEM),
        scratch_shapes=[pltpu.VMEM((T, 4 * HP), jnp.float32)],
        input_output_aliases={6: 1, 7: 2},        # h0 -> h_out, c0 -> c_out
    )(seq2d, wih_row, whh_p, b_p, wlin_row, blin_p, h_p, c_p)

    return pred_p[0], h_new, c_new


def lstm_reference(seq, h, c, wih, whh, bih, bhh, wlin, blin):
    # Pure-JAX fp32 reference matching torch.nn.LSTM + nn.Linear semantics,
    # stateful in (h, c) like the module's self.hidden.
    for t in range(seq.shape[0]):
        x = seq[t].reshape(1, F)
        gates = x @ wih.T + bih + h @ whh.T + bhh
        i_g = jax.nn.sigmoid(gates[:, 0 * H:1 * H])
        f_g = jax.nn.sigmoid(gates[:, 1 * H:2 * H])
        g_g = jnp.tanh(gates[:, 2 * H:3 * H])
        o_g = jax.nn.sigmoid(gates[:, 3 * H:4 * H])
        c = f_g * c + i_g * g_g
        h = o_g * jnp.tanh(c)
    pred_last = (h @ wlin.T + blin)[0]          # == pred[-1]
    return pred_last, h, c


if __name__ == "__main__":
    key = jax.random.PRNGKey(0)
    ks = jax.random.split(key, 8)
    bound = 1.0 / jnp.sqrt(jnp.float32(H))      # PyTorch default init range

    wih = jax.random.uniform(ks[0], (4 * H, F), jnp.float32, -bound, bound)
    whh = jax.random.uniform(ks[1], (4 * H, H), jnp.float32, -bound, bound)
    bih = jax.random.uniform(ks[2], (4 * H,), jnp.float32, -bound, bound)
    bhh = jax.random.uniform(ks[3], (4 * H,), jnp.float32, -bound, bound)
    wlin = jax.random.uniform(ks[4], (OUT, H), jnp.float32, -bound, bound)
    blin = jax.random.uniform(ks[5], (OUT,), jnp.float32, -bound, bound)

    T = 8
    seq1 = jax.random.normal(ks[6], (T,), jnp.float32)
    seq2 = jax.random.normal(ks[7], (T,), jnp.float32)

    # Pack once, reuse across calls (hoisted out of the jitted forward).
    packed = pack_params(wih, whh, bih, bhh, wlin, blin)

    # Padded (1, HP) state carried across forward() calls; padded lanes stay 0.
    h_p = jnp.zeros((1, HP), jnp.float32)
    c_p = jnp.zeros((1, HP), jnp.float32)
    hr = jnp.zeros((1, H), jnp.float32)
    cr = jnp.zeros((1, H), jnp.float32)

    # bf16 recurrent weights (MXU-native, per perf review) vs the fp32
    # reference: tolerance reflects bf16 operand rounding through 2*T steps.
    TOL = dict(atol=5e-3, rtol=5e-3)

    # Two forward() calls, carrying hidden state like the nn.Module does.
    for seq in (seq1, seq2):
        pred, h_p, c_p = lstm_forward(seq, h_p, c_p, *packed)
        pred = jax.block_until_ready(pred)
        h_p = jax.block_until_ready(h_p)
        c_p = jax.block_until_ready(c_p)
        pred_ref, hr, cr = lstm_reference(seq, hr, cr,
                                          wih, whh, bih, bhh, wlin, blin)
        assert pred.shape == (OUT,)
        assert jnp.allclose(pred, pred_ref, **TOL), (pred, pred_ref)
        assert jnp.allclose(h_p[0, :H], hr[0], **TOL)
        assert jnp.allclose(c_p[0, :H], cr[0], **TOL)
        # Padded-lane hygiene: nothing may leak into the recurrence.
        assert jnp.all(h_p[0, H:] == 0.0) and jnp.all(c_p[0, H:] == 0.0)

    print("KERNEL_OK")
</pallas_src>

<mosaic_0001>
module attributes {stable_mosaic.version = 11 : i64} {
  func.func @lstm_kernel(%arg0: memref<8x1xf32, #tpu.memory_space<vmem>>, %arg1: memref<1x512xf32, #tpu.memory_space<vmem>>, %arg2: memref<128x512xbf16, #tpu.memory_space<vmem>>, %arg3: memref<1x512xf32, #tpu.memory_space<vmem>>, %arg4: memref<1x128xf32, #tpu.memory_space<vmem>>, %arg5: memref<1x1xf32, #tpu.memory_space<vmem>>, %arg6: memref<1x128xf32, #tpu.memory_space<vmem>>, %arg7: memref<1x128xf32, #tpu.memory_space<vmem>>, %arg8: memref<1x1xf32, #tpu.memory_space<vmem>>, %arg9: memref<1x128xf32, #tpu.memory_space<vmem>>, %arg10: memref<1x128xf32, #tpu.memory_space<vmem>>, %arg11: memref<8x512xf32, #tpu.memory_space<vmem>>) attributes {dimension_semantics = [], scalar_prefetch = 0 : i64, scratch_operands = 1 : i64, tpu.core_type = #tpu.core_type<tc>} {
    %c0 = arith.constant 0 : index
    %c0_0 = arith.constant 0 : index
    %0 = vector.load %arg0[%c0, %c0_0] : memref<8x1xf32, #tpu.memory_space<vmem>>, vector<8x1xf32>
    %c0_1 = arith.constant 0 : index
    %c0_2 = arith.constant 0 : index
    %1 = vector.load %arg1[%c0_1, %c0_2] : memref<1x512xf32, #tpu.memory_space<vmem>>, vector<1x512xf32>
    %2 = vector.broadcast %0 : vector<8x1xf32> to vector<8x512xf32>
    %3 = vector.broadcast %1 : vector<1x512xf32> to vector<8x512xf32>
    %4 = arith.mulf %2, %3 : vector<8x512xf32>
    %c0_3 = arith.constant 0 : index
    %c0_4 = arith.constant 0 : index
    %5 = vector.load %arg3[%c0_3, %c0_4] : memref<1x512xf32, #tpu.memory_space<vmem>>, vector<1x512xf32>
    %6 = vector.broadcast %5 : vector<1x512xf32> to vector<8x512xf32>
    %7 = arith.addf %4, %6 : vector<8x512xf32>
    %c0_5 = arith.constant 0 : index
    %c0_6 = arith.constant 0 : index
    %8 = vector.load %arg11[%c0_5, %c0_6] : memref<8x512xf32, #tpu.memory_space<vmem>>, vector<8x512xf32>
    tpu.vector_store %arg11[%c0_5, %c0_6], %7 {strides = array<i32>} : memref<8x512xf32, #tpu.memory_space<vmem>>, vector<8x512xf32>,
    %c0_7 = arith.constant 0 : index
    %c0_8 = arith.constant 0 : index
    %9 = vector.load %arg2[%c0_7, %c0_8] : memref<128x512xbf16, #tpu.memory_space<vmem>>, vector<128x512xbf16>
    %c0_9 = arith.constant 0 : index
    %c0_10 = arith.constant 0 : index
    %10 = vector.load %arg6[%c0_9, %c0_10] : memref<1x128xf32, #tpu.memory_space<vmem>>, vector<1x128xf32>
    %c0_11 = arith.constant 0 : index
    %c0_12 = arith.constant 0 : index
    %11 = vector.load %arg7[%c0_11, %c0_12] : memref<1x128xf32, #tpu.memory_space<vmem>>, vector<1x128xf32>
    %c0_i32 = arith.constant 0 : i32
    %12 = arith.index_cast %c0_i32 : i32 to index
    %c0_13 = arith.constant 0 : index
    %13 = vector.load %arg11[%12, %c0_13] : memref<8x512xf32, #tpu.memory_space<vmem>>, vector<1x512xf32>
    %14 = arith.truncf %10 : vector<1x128xf32> to vector<1x128xbf16>
    %cst = arith.constant dense<0.000000e+00> : vector<1x512xf32>
    %15 = tpu.matmul %14, %9, %cst {dimension_numbers = #tpu.dot_dimension_numbers<[1], [0], [0], [1], [0, 0, 1, 1], [], []>} : vector<1x128xbf16>, vector<128x512xbf16>, vector<1x512xf32> -> vector<1x512xf32>
    %16 = arith.addf %13, %15 : vector<1x512xf32>
    %17 = math.tanh %16 : vector<1x512xf32>
    %18 = vector.extract_strided_slice %17 {offsets = [0, 0], sizes = [1, 128], strides = [1, 1]} : vector<1x512xf32> to vector<1x128xf32>
    %cst_14 = arith.constant 5.000000e-01 : f32
    %19 = vector.broadcast %cst_14 : f32 to vector<1x128xf32>
    %20 = arith.mulf %19, %18 : vector<1x128xf32>
    %cst_15 = arith.constant 5.000000e-01 : f32
    %21 = vector.broadcast %cst_15 : f32 to vector<1x128xf32>
    %22 = arith.addf %20, %21 : vector<1x128xf32>
    %23 = vector.extract_strided_slice %17 {offsets = [0, 128], sizes = [1, 128], strides = [1, 1]} : vector<1x512xf32> to vector<1x128xf32>
    %cst_16 = arith.constant 5.000000e-01 : f32
    %24 = vector.broadcast %cst_16 : f32 to vector<1x128xf32>
    %25 = arith.mulf %24, %23 : vector<1x128xf32>
    %cst_17 = arith.constant 5.000000e-01 : f32
    %26 = vector.broadcast %cst_17 : f32 to vector<1x128xf32>
    %27 = arith.addf %25, %26 : vector<1x128xf32>
    %28 = vector.extract_strided_slice %17 {offsets = [0, 256], sizes = [1, 128], strides = [1, 1]} : vector<1x512xf32> to vector<1x128xf32>
    %29 = vector.extract_strided_slice %17 {offsets = [0, 384], sizes = [1, 128], strides = [1, 1]} : vector<1x512xf32> to vector<1x128xf32>
    %cst_18 = arith.constant 5.000000e-01 : f32
    %30 = vector.broadcast %cst_18 : f32 to vector<1x128xf32>
    %31 = arith.mulf %30, %29 : vector<1x128xf32>
    %cst_19 = arith.constant 5.000000e-01 : f32
    %32 = vector.broadcast %cst_19 : f32 to vector<1x128xf32>
    %33 = arith.addf %31, %32 : vector<1x128xf32>
    %34 = arith.mulf %27, %11 : vector<1x128xf32>
    %35 = arith.mulf %22, %28 : vector<1x128xf32>
    %36 = arith.addf %34, %35 : vector<1x128xf32>
    %37 = math.tanh %36 : vector<1x128xf32>
    %38 = arith.mulf %33, %37 : vector<1x128xf32>
    %c1_i32 = arith.constant 1 : i32
    %39 = arith.index_cast %c1_i32 : i32 to index
    %c0_20 = arith.constant 0 : index
    %40 = vector.load %arg11[%39, %c0_20] : memref<8x512xf32, #tpu.memory_space<vmem>>, vector<1x512xf32>
    %41 = arith.truncf %38 : vector<1x128xf32> to vector<1x128xbf16>
    %cst_21 = arith.constant dense<0.000000e+00> : vector<1x512xf32>
    %42 = tpu.matmul %41, %9, %cst_21 {dimension_numbers = #tpu.dot_dimension_numbers<[1], [0], [0], [1], [0, 0, 1, 1], [], []>} : vector<1x128xbf16>, vector<128x512xbf16>, vector<1x512xf32> -> vector<1x512xf32>
    %43 = arith.addf %40, %42 : vector<1x512xf32>
    %44 = math.tanh %43 : vector<1x512xf32>
    %45 = vector.extract_strided_slice %44 {offsets = [0, 0], sizes = [1, 128], strides = [1, 1]} : vector<1x512xf32> to vector<1x128xf32>
    %cst_22 = arith.constant 5.000000e-01 : f32
    %46 = vector.broadcast %cst_22 : f32 to vector<1x128xf32>
    %47 = arith.mulf %46, %45 : vector<1x128xf32>
    %cst_23 = arith.constant 5.000000e-01 : f32
    %48 = vector.broadcast %cst_23 : f32 to vector<1x128xf32>
    %49 = arith.addf %47, %48 : vector<1x128xf32>
    %50 = vector.extract_strided_slice %44 {offsets = [0, 128], sizes = [1, 128], strides = [1, 1]} : vector<1x512xf32> to vector<1x128xf32>
    %cst_24 = arith.constant 5.000000e-01 : f32
    %51 = vector.broadcast %cst_24 : f32 to vector<1x128xf32>
    %52 = arith.mulf %51, %50 : vector<1x128xf32>
    %cst_25 = arith.constant 5.000000e-01 : f32
    %53 = vector.broadcast %cst_25 : f32 to vector<1x128xf32>
    %54 = arith.addf %52, %53 : vector<1x128xf32>
    %55 = vector.extract_strided_slice %44 {offsets = [0, 256], sizes = [1, 128], strides = [1, 1]} : vector<1x512xf32> to vector<1x128xf32>
    %56 = vector.extract_strided_slice %44 {offsets = [0, 384], sizes = [1, 128], strides = [1, 1]} : vector<1x512xf32> to vector<1x128xf32>
    %cst_26 = arith.constant 5.000000e-01 : f32
    %57 = vector.broadcast %cst_26 : f32 to vector<1x128xf32>
    %58 = arith.mulf %57, %56 : vector<1x128xf32>
    %cst_27 = arith.constant 5.000000e-01 : f32
    %59 = vector.broadcast %cst_27 : f32 to vector<1x128xf32>
    %60 = arith.addf %58, %59 : vector<1x128xf32>
    %61 = arith.mulf %54, %36 : vector<1x128xf32>
    %62 = arith.mulf %49, %55 : vector<1x128xf32>
    %63 = arith.addf %61, %62 : vector<1x128xf32>
    %64 = math.tanh %63 : vector<1x128xf32>
    %65 = arith.mulf %60, %64 : vector<1x128xf32>
    %c2_i32 = arith.constant 2 : i32
    %66 = arith.index_cast %c2_i32 : i32 to index
    %c0_28 = arith.constant 0 : index
    %67 = vector.load %arg11[%66, %c0_28] : memref<8x512xf32, #tpu.memory_space<vmem>>, vector<1x512xf32>
    %68 = arith.truncf %65 : vector<1x128xf32> to vector<1x128xbf16>
    %cst_29 = arith.constant dense<0.000000e+00> : vector<1x512xf32>
    %69 = tpu.matmul %68, %9, %cst_29 {dimension_numbers = #tpu.dot_dimension_numbers<[1], [0], [0], [1], [0, 0, 1, 1], [], []>} : vector<1x128xbf16>, vector<128x512xbf16>, vector<1x512xf32> -> vector<1x512xf32>
    %70 = arith.addf %67, %69 : vector<1x512xf32>
    %71 = math.tanh %70 : vector<1x512xf32>
    %72 = vector.extract_strided_slice %71 {offsets = [0, 0], sizes = [1, 128], strides = [1, 1]} : vector<1x512xf32> to vector<1x128xf32>
    %cst_30 = arith.constant 5.000000e-01 : f32
    %73 = vector.broadcast %cst_30 : f32 to vector<1x128xf32>
    %74 = arith.mulf %73, %72 : vector<1x128xf32>
    %cst_31 = arith.constant 5.000000e-01 : f32
    %75 = vector.broadcast %cst_31 : f32 to vector<1x128xf32>
    %76 = arith.addf %74, %75 : vector<1x128xf32>
    %77 = vector.extract_strided_slice %71 {offsets = [0, 128], sizes = [1, 128], strides = [1, 1]} : vector<1x512xf32> to vector<1x128xf32>
    %cst_32 = arith.constant 5.000000e-01 : f32
    %78 = vector.broadcast %cst_32 : f32 to vector<1x128xf32>
    %79 = arith.mulf %78, %77 : vector<1x128xf32>
    %cst_33 = arith.constant 5.000000e-01 : f32
    %80 = vector.broadcast %cst_33 : f32 to vector<1x128xf32>
    %81 = arith.addf %79, %80 : vector<1x128xf32>
    %82 = vector.extract_strided_slice %71 {offsets = [0, 256], sizes = [1, 128], strides = [1, 1]} : vector<1x512xf32> to vector<1x128xf32>
    %83 = vector.extract_strided_slice %71 {offsets = [0, 384], sizes = [1, 128], strides = [1, 1]} : vector<1x512xf32> to vector<1x128xf32>
    %cst_34 = arith.constant 5.000000e-01 : f32
    %84 = vector.broadcast %cst_34 : f32 to vector<1x128xf32>
    %85 = arith.mulf %84, %83 : vector<1x128xf32>
    %cst_35 = arith.constant 5.000000e-01 : f32
    %86 = vector.broadcast %cst_35 : f32 to vector<1x128xf32>
    %87 = arith.addf %85, %86 : vector<1x128xf32>
    %88 = arith.mulf %81, %63 : vector<1x128xf32>
    %89 = arith.mulf %76, %82 : vector<1x128xf32>
    %90 = arith.addf %88, %89 : vector<1x128xf32>
    %91 = math.tanh %90 : vector<1x128xf32>
    %92 = arith.mulf %87, %91 : vector<1x128xf32>
    %c3_i32 = arith.constant 3 : i32
    %93 = arith.index_cast %c3_i32 : i32 to index
    %c0_36 = arith.constant 0 : index
    %94 = vector.load %arg11[%93, %c0_36] : memref<8x512xf32, #tpu.memory_space<vmem>>, vector<1x512xf32>
    %95 = arith.truncf %92 : vector<1x128xf32> to vector<1x128xbf16>
    %cst_37 = arith.constant dense<0.000000e+00> : vector<1x512xf32>
    %96 = tpu.matmul %95, %9, %cst_37 {dimension_numbers = #tpu.dot_dimension_numbers<[1], [0], [0], [1], [0, 0, 1, 1], [], []>} : vector<1x128xbf16>, vector<128x512xbf16>, vector<1x512xf32> -> vector<1x512xf32>
    %97 = arith.addf %94, %96 : vector<1x512xf32>
    %98 = math.tanh %97 : vector<1x512xf32>
    %99 = vector.extract_strided_slice %98 {offsets = [0, 0], sizes = [1, 128], strides = [1, 1]} : vector<1x512xf32> to vector<1x128xf32>
    %cst_38 = arith.constant 5.000000e-01 : f32
    %100 = vector.broadcast %cst_38 : f32 to vector<1x128xf32>
    %101 = arith.mulf %100, %99 : vector<1x128xf32>
    %cst_39 = arith.constant 5.000000e-01 : f32
    %102 = vector.broadcast %cst_39 : f32 to vector<1x128xf32>
    %103 = arith.addf %101, %102 : vector<1x128xf32>
    %104 = vector.extract_strided_slice %98 {offsets = [0, 128], sizes = [1, 128], strides = [1, 1]} : vector<1x512xf32> to vector<1x128xf32>
    %cst_40 = arith.constant 5.000000e-01 : f32
    %105 = vector.broadcast %cst_40 : f32 to vector<1x128xf32>
    %106 = arith.mulf %105, %104 : vector<1x128xf32>
    %cst_41 = arith.constant 5.000000e-01 : f32
    %107 = vector.broadcast %cst_41 : f32 to vector<1x128xf32>
    %108 = arith.addf %106, %107 : vector<1x128xf32>
    %109 = vector.extract_strided_slice %98 {offsets = [0, 256], sizes = [1, 128], strides = [1, 1]} : vector<1x512xf32> to vector<1x128xf32>
    %110 = vector.extract_strided_slice %98 {offsets = [0, 384], sizes = [1, 128], strides = [1, 1]} : vector<1x512xf32> to vector<1x128xf32>
    %cst_42 = arith.constant 5.000000e-01 : f32
    %111 = vector.broadcast %cst_42 : f32 to vector<1x128xf32>
    %112 = arith.mulf %111, %110 : vector<1x128xf32>
    %cst_43 = arith.constant 5.000000e-01 : f32
    %113 = vector.broadcast %cst_43 : f32 to vector<1x128xf32>
    %114 = arith.addf %112, %113 : vector<1x128xf32>
    %115 = arith.mulf %108, %90 : vector<1x128xf32>
    %116 = arith.mulf %103, %109 : vector<1x128xf32>
    %117 = arith.addf %115, %116 : vector<1x128xf32>
    %118 = math.tanh %117 : vector<1x128xf32>
    %119 = arith.mulf %114, %118 : vector<1x128xf32>
    %c4_i32 = arith.constant 4 : i32
    %120 = arith.index_cast %c4_i32 : i32 to index
    %c0_44 = arith.constant 0 : index
    %121 = vector.load %arg11[%120, %c0_44] : memref<8x512xf32, #tpu.memory_space<vmem>>, vector<1x512xf32>
    %122 = arith.truncf %119 : vector<1x128xf32> to vector<1x128xbf16>
    %cst_45 = arith.constant dense<0.000000e+00> : vector<1x512xf32>
    %123 = tpu.matmul %122, %9, %cst_45 {dimension_numbers = #tpu.dot_dimension_numbers<[1], [0], [0], [1], [0, 0, 1, 1], [], []>} : vector<1x128xbf16>, vector<128x512xbf16>, vector<1x512xf32> -> vector<1x512xf32>
    %124 = arith.addf %121, %123 : vector<1x512xf32>
    %125 = math.tanh %124 : vector<1x512xf32>
    %126 = vector.extract_strided_slice %125 {offsets = [0, 0], sizes = [1, 128], strides = [1, 1]} : vector<1x512xf32> to vector<1x128xf32>
    %cst_46 = arith.constant 5.000000e-01 : f32
    %127 = vector.broadcast %cst_46 : f32 to vector<1x128xf32>
    %128 = arith.mulf %127, %126 : vector<1x128xf32>
    %cst_47 = arith.constant 5.000000e-01 : f32
    %129 = vector.broadcast %cst_47 : f32 to vector<1x128xf32>
    %130 = arith.addf %128, %129 : vector<1x128xf32>
    %131 = vector.extract_strided_slice %125 {offsets = [0, 128], sizes = [1, 128], strides = [1, 1]} : vector<1x512xf32> to vector<1x128xf32>
    %cst_48 = arith.constant 5.000000e-01 : f32
    %132 = vector.broadcast %cst_48 : f32 to vector<1x128xf32>
    %133 = arith.mulf %132, %131 : vector<1x128xf32>
    %cst_49 = arith.constant 5.000000e-01 : f32
    %134 = vector.broadcast %cst_49 : f32 to vector<1x128xf32>
    %135 = arith.addf %133, %134 : vector<1x128xf32>
    %136 = vector.extract_strided_slice %125 {offsets = [0, 256], sizes = [1, 128], strides = [1, 1]} : vector<1x512xf32> to vector<1x128xf32>
    %137 = vector.extract_strided_slice %125 {offsets = [0, 384], sizes = [1, 128], strides = [1, 1]} : vector<1x512xf32> to vector<1x128xf32>
    %cst_50 = arith.constant 5.000000e-01 : f32
    %138 = vector.broadcast %cst_50 : f32 to vector<1x128xf32>
    %139 = arith.mulf %138, %137 : vector<1x128xf32>
    %cst_51 = arith.constant 5.000000e-01 : f32
    %140 = vector.broadcast %cst_51 : f32 to vector<1x128xf32>
    %141 = arith.addf %139, %140 : vector<1x128xf32>
    %142 = arith.mulf %135, %117 : vector<1x128xf32>
    %143 = arith.mulf %130, %136 : vector<1x128xf32>
    %144 = arith.addf %142, %143 : vector<1x128xf32>
    %145 = math.tanh %144 : vector<1x128xf32>
    %146 = arith.mulf %141, %145 : vector<1x128xf32>
    %c5_i32 = arith.constant 5 : i32
    %147 = arith.index_cast %c5_i32 : i32 to index
    %c0_52 = arith.constant 0 : index
    %148 = vector.load %arg11[%147, %c0_52] : memref<8x512xf32, #tpu.memory_space<vmem>>, vector<1x512xf32>
    %149 = arith.truncf %146 : vector<1x128xf32> to vector<1x128xbf16>
    %cst_53 = arith.constant dense<0.000000e+00> : vector<1x512xf32>
    %150 = tpu.matmul %149, %9, %cst_53 {dimension_numbers = #tpu.dot_dimension_numbers<[1], [0], [0], [1], [0, 0, 1, 1], [], []>} : vector<1x128xbf16>, vector<128x512xbf16>, vector<1x512xf32> -> vector<1x512xf32>
    %151 = arith.addf %148, %150 : vector<1x512xf32>
    %152 = math.tanh %151 : vector<1x512xf32>
    %153 = vector.extract_strided_slice %152 {offsets = [0, 0], sizes = [1, 128], strides = [1, 1]} : vector<1x512xf32> to vector<1x128xf32>
    %cst_54 = arith.constant 5.000000e-01 : f32
    %154 = vector.broadcast %cst_54 : f32 to vector<1x128xf32>
    %155 = arith.mulf %154, %153 : vector<1x128xf32>
    %cst_55 = arith.constant 5.000000e-01 : f32
    %156 = vector.broadcast %cst_55 : f32 to vector<1x128xf32>
    %157 = arith.addf %155, %156 : vector<1x128xf32>
    %158 = vector.extract_strided_slice %152 {offsets = [0, 128], sizes = [1, 128], strides = [1, 1]} : vector<1x512xf32> to vector<1x128xf32>
    %cst_56 = arith.constant 5.000000e-01 : f32
    %159 = vector.broadcast %cst_56 : f32 to vector<1x128xf32>
    %160 = arith.mulf %159, %158 : vector<1x128xf32>
    %cst_57 = arith.constant 5.000000e-01 : f32
    %161 = vector.broadcast %cst_57 : f32 to vector<1x128xf32>
    %162 = arith.addf %160, %161 : vector<1x128xf32>
    %163 = vector.extract_strided_slice %152 {offsets = [0, 256], sizes = [1, 128], strides = [1, 1]} : vector<1x512xf32> to vector<1x128xf32>
    %164 = vector.extract_strided_slice %152 {offsets = [0, 384], sizes = [1, 128], strides = [1, 1]} : vector<1x512xf32> to vector<1x128xf32>
    %cst_58 = arith.constant 5.000000e-01 : f32
    %165 = vector.broadcast %cst_58 : f32 to vector<1x128xf32>
    %166 = arith.mulf %165, %164 : vector<1x128xf32>
    %cst_59 = arith.constant 5.000000e-01 : f32
    %167 = vector.broadcast %cst_59 : f32 to vector<1x128xf32>
    %168 = arith.addf %166, %167 : vector<1x128xf32>
    %169 = arith.mulf %162, %144 : vector<1x128xf32>
    %170 = arith.mulf %157, %163 : vector<1x128xf32>
    %171 = arith.addf %169, %170 : vector<1x128xf32>
    %172 = math.tanh %171 : vector<1x128xf32>
    %173 = arith.mulf %168, %172 : vector<1x128xf32>
    %c6_i32 = arith.constant 6 : i32
    %174 = arith.index_cast %c6_i32 : i32 to index
    %c0_60 = arith.constant 0 : index
    %175 = vector.load %arg11[%174, %c0_60] : memref<8x512xf32, #tpu.memory_space<vmem>>, vector<1x512xf32>
    %176 = arith.truncf %173 : vector<1x128xf32> to vector<1x128xbf16>
    %cst_61 = arith.constant dense<0.000000e+00> : vector<1x512xf32>
    %177 = tpu.matmul %176, %9, %cst_61 {dimension_numbers = #tpu.dot_dimension_numbers<[1], [0], [0], [1], [0, 0, 1, 1], [], []>} : vector<1x128xbf16>, vector<128x512xbf16>, vector<1x512xf32> -> vector<1x512xf32>
    %178 = arith.addf %175, %177 : vector<1x512xf32>
    %179 = math.tanh %178 : vector<1x512xf32>
    %180 = vector.extract_strided_slice %179 {offsets = [0, 0], sizes = [1, 128], strides = [1, 1]} : vector<1x512xf32> to vector<1x128xf32>
    %cst_62 = arith.constant 5.000000e-01 : f32
    %181 = vector.broadcast %cst_62 : f32 to vector<1x128xf32>
    %182 = arith.mulf %181, %180 : vector<1x128xf32>
    %cst_63 = arith.constant 5.000000e-01 : f32
    %183 = vector.broadcast %cst_63 : f32 to vector<1x128xf32>
    %184 = arith.addf %182, %183 : vector<1x128xf32>
    %185 = vector.extract_strided_slice %179 {offsets = [0, 128], sizes = [1, 128], strides = [1, 1]} : vector<1x512xf32> to vector<1x128xf32>
    %cst_64 = arith.constant 5.000000e-01 : f32
    %186 = vector.broadcast %cst_64 : f32 to vector<1x128xf32>
    %187 = arith.mulf %186, %185 : vector<1x128xf32>
    %cst_65 = arith.constant 5.000000e-01 : f32
    %188 = vector.broadcast %cst_65 : f32 to vector<1x128xf32>
    %189 = arith.addf %187, %188 : vector<1x128xf32>
    %190 = vector.extract_strided_slice %179 {offsets = [0, 256], sizes = [1, 128], strides = [1, 1]} : vector<1x512xf32> to vector<1x128xf32>
    %191 = vector.extract_strided_slice %179 {offsets = [0, 384], sizes = [1, 128], strides = [1, 1]} : vector<1x512xf32> to vector<1x128xf32>
    %cst_66 = arith.constant 5.000000e-01 : f32
    %192 = vector.broadcast %cst_66 : f32 to vector<1x128xf32>
    %193 = arith.mulf %192, %191 : vector<1x128xf32>
    %cst_67 = arith.constant 5.000000e-01 : f32
    %194 = vector.broadcast %cst_67 : f32 to vector<1x128xf32>
    %195 = arith.addf %193, %194 : vector<1x128xf32>
    %196 = arith.mulf %189, %171 : vector<1x128xf32>
    %197 = arith.mulf %184, %190 : vector<1x128xf32>
    %198 = arith.addf %196, %197 : vector<1x128xf32>
    %199 = math.tanh %198 : vector<1x128xf32>
    %200 = arith.mulf %195, %199 : vector<1x128xf32>
    %c7_i32 = arith.constant 7 : i32
    %201 = arith.index_cast %c7_i32 : i32 to index
    %c0_68 = arith.constant 0 : index
    %202 = vector.load %arg11[%201, %c0_68] : memref<8x512xf32, #tpu.memory_space<vmem>>, vector<1x512xf32>
    %203 = arith.truncf %200 : vector<1x128xf32> to vector<1x128xbf16>
    %cst_69 = arith.constant dense<0.000000e+00> : vector<1x512xf32>
    %204 = tpu.matmul %203, %9, %cst_69 {dimension_numbers = #tpu.dot_dimension_numbers<[1], [0], [0], [1], [0, 0, 1, 1], [], []>} : vector<1x128xbf16>, vector<128x512xbf16>, vector<1x512xf32> -> vector<1x512xf32>
    %205 = arith.addf %202, %204 : vector<1x512xf32>
    %206 = math.tanh %205 : vector<1x512xf32>
    %207 = vector.extract_strided_slice %206 {offsets = [0, 0], sizes = [1, 128], strides = [1, 1]} : vector<1x512xf32> to vector<1x128xf32>
    %cst_70 = arith.constant 5.000000e-01 : f32
    %208 = vector.broadcast %cst_70 : f32 to vector<1x128xf32>
    %209 = arith.mulf %208, %207 : vector<1x128xf32>
    %cst_71 = arith.constant 5.000000e-01 : f32
    %210 = vector.broadcast %cst_71 : f32 to vector<1x128xf32>
    %211 = arith.addf %209, %210 : vector<1x128xf32>
    %212 = vector.extract_strided_slice %206 {offsets = [0, 128], sizes = [1, 128], strides = [1, 1]} : vector<1x512xf32> to vector<1x128xf32>
    %cst_72 = arith.constant 5.000000e-01 : f32
    %213 = vector.broadcast %cst_72 : f32 to vector<1x128xf32>
    %214 = arith.mulf %213, %212 : vector<1x128xf32>
    %cst_73 = arith.constant 5.000000e-01 : f32
    %215 = vector.broadcast %cst_73 : f32 to vector<1x128xf32>
    %216 = arith.addf %214, %215 : vector<1x128xf32>
    %217 = vector.extract_strided_slice %206 {offsets = [0, 256], sizes = [1, 128], strides = [1, 1]} : vector<1x512xf32> to vector<1x128xf32>
    %218 = vector.extract_strided_slice %206 {offsets = [0, 384], sizes = [1, 128], strides = [1, 1]} : vector<1x512xf32> to vector<1x128xf32>
    %cst_74 = arith.constant 5.000000e-01 : f32
    %219 = vector.broadcast %cst_74 : f32 to vector<1x128xf32>
    %220 = arith.mulf %219, %218 : vector<1x128xf32>
    %cst_75 = arith.constant 5.000000e-01 : f32
    %221 = vector.broadcast %cst_75 : f32 to vector<1x128xf32>
    %222 = arith.addf %220, %221 : vector<1x128xf32>
    %223 = arith.mulf %216, %198 : vector<1x128xf32>
    %224 = arith.mulf %211, %217 : vector<1x128xf32>
    %225 = arith.addf %223, %224 : vector<1x128xf32>
    %226 = math.tanh %225 : vector<1x128xf32>
    %227 = arith.mulf %222, %226 : vector<1x128xf32>
    %c8_i32 = arith.constant 8 : i32
    %c0_76 = arith.constant 0 : index
    %c0_77 = arith.constant 0 : index
    %228 = vector.load %arg9[%c0_76, %c0_77] : memref<1x128xf32, #tpu.memory_space<vmem>>, vector<1x128xf32>
    tpu.vector_store %arg9[%c0_76, %c0_77], %227 {strides = array<i32>} : memref<1x128xf32, #tpu.memory_space<vmem>>, vector<1x128xf32>,
    %c0_78 = arith.constant 0 : index
    %c0_79 = arith.constant 0 : index
    %229 = vector.load %arg10[%c0_78, %c0_79] : memref<1x128xf32, #tpu.memory_space<vmem>>, vector<1x128xf32>
    tpu.vector_store %arg10[%c0_78, %c0_79], %225 {strides = array<i32>} : memref<1x128xf32, #tpu.memory_space<vmem>>, vector<1x128xf32>,
    %c0_80 = arith.constant 0 : index
    %c0_81 = arith.constant 0 : index
    %230 = vector.load %arg4[%c0_80, %c0_81] : memref<1x128xf32, #tpu.memory_space<vmem>>, vector<1x128xf32>
    %231 = arith.mulf %227, %230 : vector<1x128xf32>
    %cst_82 = arith.constant dense<0.000000e+00> : vector<1xf32>
    %232 = vector.multi_reduction <add>, %231, %cst_82 [1] : vector<1x128xf32> to vector<1xf32>
    %233 = vector.shape_cast %232 : vector<1xf32> to vector<1x1xf32>
    %c0_83 = arith.constant 0 : index
    %c0_84 = arith.constant 0 : index
    %234 = vector.load %arg5[%c0_83, %c0_84] : memref<1x1xf32, #tpu.memory_space<vmem>>, vector<1x1xf32>
    %235 = arith.addf %233, %234 : vector<1x1xf32>
    %c0_85 = arith.constant 0 : index
    %c0_86 = arith.constant 0 : index
    %236 = vector.load %arg8[%c0_85, %c0_86] : memref<1x1xf32, #tpu.memory_space<vmem>>, vector<1x1xf32>
    tpu.vector_store %arg8[%c0_85, %c0_86], %235 {strides = array<i32>} : memref<1x1xf32, #tpu.memory_space<vmem>>, vector<1x1xf32>,
    return
  }
}

</mosaic_0001>

<llo_original>
// kernel: lstm_forward.1
$region0: #{lstm_forward.1}
  #allocation0 [shape = 'u32[]', space=smem, size = 0x4, offset = 0x4, fixed_abs, tag = 'smem constant byte address 0x4 - core index']
  #allocation1 [shape = 'u32[144,128]{1,0:T(1,128)}', space=vmem, size = 0x12000, scoped, tag = 'internal scratch']
  #allocation2 [shape = 'f32[8,512]{1,0:T(8,128)}', space=vmem, size = 0x4000, scoped, tag = 'scratch operand']
  #allocation3 [shape = 'f32[1,1]{1,0:T(1,128)S(1)}', space=vmem, size = 0x200, scoped, tag = 'scoped memory for lstm_forward.1']
  %s0 = inlined_call_operand.vmem [shape: f32[8,1], index: 0, kind: input, shape index: {}]
  %s1 = inlined_call_operand.vmem [shape: f32[1,512], index: 1, kind: input, shape index: {}]
  %s2 = inlined_call_operand.hbm [shape: bf16[128,512], index: 2, kind: input, shape index: {}]
  %s3 = inlined_call_operand.vmem [shape: f32[1,512], index: 3, kind: input, shape index: {}]
  %s4 = inlined_call_operand.vmem [shape: f32[1,128], index: 4, kind: input, shape index: {}]
  %s5 = inlined_call_operand.<no memory space> [shape: f32[1,1], index: 5, kind: input, shape index: {}]
  %s6 = inlined_call_operand.vmem [shape: f32[1,128], index: 6, kind: input, shape index: {}, may-alias: {6,9}]
  %s7 = inlined_call_operand.vmem [shape: f32[1,128], index: 7, kind: input, shape index: {}, may-alias: {7,10}]
  %s8 = inlined_call_operand.hbm [shape: f32[1,1], index: 8, kind: output, shape index: {0}]
  %s9 = inlined_call_operand.vmem [shape: f32[1,128], index: 9, kind: output, shape index: {1}, may-alias: {6,9}]
  %s10 = inlined_call_operand.vmem [shape: f32[1,128], index: 10, kind: output, shape index: {2}, may-alias: {7,10}]
  %11 = xla_tuple %s8, %s9, %s10
  %s12 = sld [smem:[#allocation0]]
  $region62: #{lstm_forward.1} parent=0
    _
  %s14 = ssub.s32 1, %s12
  %s15 = scalar_select 0, %s14, %s12
  %v16 = vstv %s5
  %17 = vst [vmem:[#allocation3] sm:$0x1] %v16
  $region1: #{lstm_forward.1} parent=0
    #allocation4 [shape = 'u8[131072]{0}', space=vmem, size = 0x20000, scoped, tag = 'input window, operand 2, single buffered']
    #allocation5 [shape = 's32[1]{0}', space=sflag, size = 0x4, scoped, tag = 'scoped memory for lstm_forward.1']
    #allocation6 [shape = 's32[1]{0}', space=sflag, size = 0x4, scoped, tag = 'scoped memory for lstm_forward.1']
    #allocation7 [shape = 'u8[512]{0}', space=vmem, size = 0x400, scoped, tag = 'output window, operand 0, single buffered']
    %18 = vsyncpa [#allocation5], 0
    %19 = vsyncpa [#allocation6], 0
    // Predicated region
    $region2: #{lstm_forward.1} parent=1 // pred_check
      _
    $region3: #{lstm_forward.1} parent=1 // pred_check_branch
      %21 = sbr.rel (0) target = $region5
    $region4: #{lstm_forward.1} parent=1 // pred_region
      _
    $region5: #{lstm_forward.1} parent=1 // pred_fallthru
      _
    // Predicated region
    $region6: #{lstm_forward.1} parent=1 // pred_check
      _
    $region7: #{lstm_forward.1} parent=1 // pred_check_branch
      %23 = sbr.rel (0) target = $region9
    $region8: #{lstm_forward.1} parent=1 // pred_region
      _
    $region9: #{lstm_forward.1} parent=1 // pred_fallthru
      _
    // Predicated region
    $region10: #{lstm_forward.1} parent=1 // pred_check
      _
    $region11: #{lstm_forward.1} parent=1 // pred_check_branch
      %25 = sbr.rel (0) target = $region13
    $region12: #{lstm_forward.1} parent=1 // pred_region
      %s27 = ssub.s32 4096, 4096
      %28 = vsyncadd [#allocation5], %s27
      %s29 = sshll.u32 [#allocation4], 4
      %s30 = int_to_ptr.vmem [resolvable:$true] %s29
      %35 = dma.hbm_to_vmem [thread:$0]  %s2, 4096, %s30, [#allocation5], 256, 256, 16
    $region13: #{lstm_forward.1} parent=1 // pred_fallthru
      _
    // Predicated region
    $region14: #{lstm_forward.1} parent=1 // pred_check
      _
    $region15: #{lstm_forward.1} parent=1 // pred_check_branch
      %37 = sbr.rel (0) target = $region17
    $region16: #{lstm_forward.1} parent=1 // pred_region
      _
    $region17: #{lstm_forward.1} parent=1 // pred_fallthru
      _
    // Predicated region
    $region18: #{lstm_forward.1} parent=1 // pred_check
      _
    $region19: #{lstm_forward.1} parent=1 // pred_check_branch
      %39 = sbr.rel (0) target = $region21
    $region20: #{lstm_forward.1} parent=1 // pred_region
      _
    $region21: #{lstm_forward.1} parent=1 // pred_fallthru
      _
    // Predicated region
    $region22: #{lstm_forward.1} parent=1 // pred_check
      _
    $region23: #{lstm_forward.1} parent=1 // pred_check_branch
      %41 = sbr.rel (0) target = $region25
    $region24: #{lstm_forward.1} parent=1 // pred_region
      _
    $region25: #{lstm_forward.1} parent=1 // pred_fallthru
      _
    // Predicated region
    $region26: #{lstm_forward.1} parent=1 // pred_check
      _
    $region27: #{lstm_forward.1} parent=1 // pred_check_branch
      %43 = sbr.rel (0) target = $region29
    $region28: #{lstm_forward.1} parent=1 // pred_region
      _
    $region29: #{lstm_forward.1} parent=1 // pred_fallthru
      _
    // Predicated region
    $region30: #{lstm_forward.1} parent=1 // pred_check
      _
    $region31: #{lstm_forward.1} parent=1 // pred_check_branch
      %45 = sbr.rel (0) target = $region33
    $region32: #{lstm_forward.1} parent=1 // pred_region
      _
    $region33: #{lstm_forward.1} parent=1 // pred_fallthru
      _
    // Predicated region
    $region34: #{lstm_forward.1} parent=1 // pred_check
      _
    $region35: #{lstm_forward.1} parent=1 // pred_check_branch
      %47 = sbr.rel (0) target = $region37
    $region36: #{lstm_forward.1} parent=1 // pred_region
      %48 = dma.done [#allocation5], 4096
    $region37: #{lstm_forward.1} parent=1 // pred_fallthru
      _
    %v50 = vld [vmem:[%s0] sm:$0xff]
    %v51 = vld [vmem:[%s1] sm:$0xf]
    %53 = vset.pattern.permute.xlu0 0
    %54 = vperm.xlu0 %53, %v50
    %v55 = vpop.permute.xlu0 %54
    %v58 = vlaneseq
    %v59 = vshrl.u32 %v58, 7
    %v60 = vsub.s32 0, %v59
    %v61 = vrot.slane %v51, %v60
    %v62 = vlaneseq
    %v63 = vshrl.u32 %v62, 7
    %v64 = vsub.s32 1, %v63
    %v65 = vrot.slane %v51, %v64
    %v66 = vlaneseq
    %v67 = vshrl.u32 %v66, 7
    %v68 = vsub.s32 2, %v67
    %v69 = vrot.slane %v51, %v68
    %v70 = vlaneseq
    %v71 = vshrl.u32 %v70, 7
    %v72 = vsub.s32 3, %v71
    %v73 = vrot.slane %v51, %v72
    %v78 = vmul.f32 %v55, %v61
    %v79 = vmul.f32 %v55, %v65
    %v80 = vmul.f32 %v55, %v69
    %v81 = vmul.f32 %v55, %v73
    %v82 = vld [vmem:[%s3] sm:$0xf]
    %v84 = vlaneseq
    %v85 = vshrl.u32 %v84, 7
    %v86 = vsub.s32 0, %v85
    %v87 = vrot.slane %v82, %v86
    %v88 = vlaneseq
    %v89 = vshrl.u32 %v88, 7
    %v90 = vsub.s32 1, %v89
    %v91 = vrot.slane %v82, %v90
    %v92 = vlaneseq
    %v93 = vshrl.u32 %v92, 7
    %v94 = vsub.s32 2, %v93
    %v95 = vrot.slane %v82, %v94
    %v96 = vlaneseq
    %v97 = vshrl.u32 %v96, 7
    %v98 = vsub.s32 3, %v97
    %v99 = vrot.slane %v82, %v98
    %v104 = vadd.f32 %v78, %v87
    %v105 = vadd.f32 %v79, %v91
    %v106 = vadd.f32 %v80, %v95
    %v107 = vadd.f32 %v81, %v99
    %108 = vst [vmem:[#allocation2] sm:$0xff] %v104
    %109 = vst [vmem:[#allocation2 + $0x8] sm:$0xff] %v105
    %110 = vst [vmem:[#allocation2 + $0x10] sm:$0xff] %v106
    %111 = vst [vmem:[#allocation2 + $0x18] sm:$0xff] %v107
    %v112 = vld [vmem:[#allocation4] sm:$0xff]
    %v113 = vld [vmem:[#allocation4 + $0x8] sm:$0xff]
    %v114 = vld [vmem:[#allocation4 + $0x10] sm:$0xff]
    %v115 = vld [vmem:[#allocation4 + $0x18] sm:$0xff]
    %v116 = vld [vmem:[#allocation4 + $0x20] sm:$0xff]
    %v117 = vld [vmem:[#allocation4 + $0x28] sm:$0xff]
    %v118 = vld [vmem:[#allocation4 + $0x30] sm:$0xff]
    %v119 = vld [vmem:[#allocation4 + $0x38] sm:$0xff]
    %v120 = vld [vmem:[#allocation4 + $0x40] sm:$0xff]
    %v121 = vld [vmem:[#allocation4 + $0x48] sm:$0xff]
    %v122 = vld [vmem:[#allocation4 + $0x50] sm:$0xff]
    %v123 = vld [vmem:[#allocation4 + $0x58] sm:$0xff]
    %v124 = vld [vmem:[#allocation4 + $0x60] sm:$0xff]
    %v125 = vld [vmem:[#allocation4 + $0x68] sm:$0xff]
    %v126 = vld [vmem:[#allocation4 + $0x70] sm:$0xff]
    %v127 = vld [vmem:[#allocation4 + $0x78] sm:$0xff]
    %v128 = vld [vmem:[#allocation4 + $0x80] sm:$0xff]
    %v129 = vld [vmem:[#allocation4 + $0x88] sm:$0xff]
    %v130 = vld [vmem:[#allocation4 + $0x90] sm:$0xff]
    %v131 = vld [vmem:[#allocation4 + $0x98] sm:$0xff]
    %v132 = vld [vmem:[#allocation4 + $0xa0] sm:$0xff]
    %v133 = vld [vmem:[#allocation4 + $0xa8] sm:$0xff]
    %v134 = vld [vmem:[#allocation4 + $0xb0] sm:$0xff]
    %v135 = vld [vmem:[#allocation4 + $0xb8] sm:$0xff]
    %v136 = vld [vmem:[#allocation4 + $0xc0] sm:$0xff]
    %v137 = vld [vmem:[#allocation4 + $0xc8] sm:$0xff]
    %v138 = vld [vmem:[#allocation4 + $0xd0] sm:$0xff]
    %v139 = vld [vmem:[#allocation4 + $0xd8] sm:$0xff]
    %v140 = vld [vmem:[#allocation4 + $0xe0] sm:$0xff]
    %v141 = vld [vmem:[#allocation4 + $0xe8] sm:$0xff]
    %v142 = vld [vmem:[#allocation4 + $0xf0] sm:$0xff]
    %v143 = vld [vmem:[#allocation4 + $0xf8] sm:$0xff]
    %v144 = vld [vmem:[%s6] sm:$0x1]
    %v145 = vld [vmem:[%s7] sm:$0x1]
    %v146 = vld [vmem:[#allocation2] ss:$8 sm:$0xf]
    %v147 = vpack.c.bf16 %v144, %v144
    %v180 = vunpack.c.l.b16 %v112
    %v181 = vunpack.c.h.b16 %v112
    %v182 = vunpack.c.l.b16 %v113
    %v183 = vunpack.c.h.b16 %v113
    %v184 = vunpack.c.l.b16 %v114
    %v185 = vunpack.c.h.b16 %v114
    %v186 = vunpack.c.l.b16 %v115
    %v187 = vunpack.c.h.b16 %v115
    %v188 = vunpack.c.l.b16 %v116
    %v189 = vunpack.c.h.b16 %v116
    %v190 = vunpack.c.l.b16 %v117
    %v191 = vunpack.c.h.b16 %v117
    %v192 = vunpack.c.l.b16 %v118
    %v193 = vunpack.c.h.b16 %v118
    %v194 = vunpack.c.l.b16 %v119
    %v195 = vunpack.c.h.b16 %v119
    %v196 = vunpack.c.l.b16 %v120
    %v197 = vunpack.c.h.b16 %v120
    %v198 = vunpack.c.l.b16 %v121
    %v199 = vunpack.c.h.b16 %v121
    %v200 = vunpack.c.l.b16 %v122
    %v201 = vunpack.c.h.b16 %v122
    %v202 = vunpack.c.l.b16 %v123
    %v203 = vunpack.c.h.b16 %v123
    %v204 = vunpack.c.l.b16 %v124
    %v205 = vunpack.c.h.b16 %v124
    %v206 = vunpack.c.l.b16 %v125
    %v207 = vunpack.c.h.b16 %v125
    %v208 = vunpack.c.l.b16 %v126
    %v209 = vunpack.c.h.b16 %v126
    %v210 = vunpack.c.l.b16 %v127
    %v211 = vunpack.c.h.b16 %v127
    %v212 = vunpack.c.l.b16 %v128
    %v213 = vunpack.c.h.b16 %v128
    %v214 = vunpack.c.l.b16 %v129
    %v215 = vunpack.c.h.b16 %v129
    %v216 = vunpack.c.l.b16 %v130
    %v217 = vunpack.c.h.b16 %v130
    %v218 = vunpack.c.l.b16 %v131
    %v219 = vunpack.c.h.b16 %v131
    %v220 = vunpack.c.l.b16 %v132
    %v221 = vunpack.c.h.b16 %v132
    %v222 = vunpack.c.l.b16 %v133
    %v223 = vunpack.c.h.b16 %v133
    %v224 = vunpack.c.l.b16 %v134
    %v225 = vunpack.c.h.b16 %v134
    %v226 = vunpack.c.l.b16 %v135
    %v227 = vunpack.c.h.b16 %v135
    %v228 = vunpack.c.l.b16 %v136
    %v229 = vunpack.c.h.b16 %v136
    %v230 = vunpack.c.l.b16 %v137
    %v231 = vunpack.c.h.b16 %v137
    %v232 = vunpack.c.l.b16 %v138
    %v233 = vunpack.c.h.b16 %v138
    %v234 = vunpack.c.l.b16 %v139
    %v235 = vunpack.c.h.b16 %v139
    %v236 = vunpack.c.l.b16 %v140
    %v237 = vunpack.c.h.b16 %v140
    %v238 = vunpack.c.l.b16 %v141
    %v239 = vunpack.c.h.b16 %v141
    %v240 = vunpack.c.l.b16 %v142
    %v241 = vunpack.c.h.b16 %v142
    %v242 = vunpack.c.l.b16 %v143
    %v243 = vunpack.c.h.b16 %v143
    %v244 = vpack.c.b16 %v184, %v180
    %v245 = vpack.c.b16 %v185, %v181
    %v246 = vpack.c.b16 %v186, %v182
    %v247 = vpack.c.b16 %v187, %v183
    %v248 = vpack.c.b16 %v192, %v188
    %v249 = vpack.c.b16 %v193, %v189
    %v250 = vpack.c.b16 %v194, %v190
    %v251 = vpack.c.b16 %v195, %v191
    %v252 = vpack.c.b16 %v200, %v196
    %v253 = vpack.c.b16 %v201, %v197
    %v254 = vpack.c.b16 %v202, %v198
    %v255 = vpack.c.b16 %v203, %v199
    %v256 = vpack.c.b16 %v208, %v204
    %v257 = vpack.c.b16 %v209, %v205
    %v258 = vpack.c.b16 %v210, %v206
    %v259 = vpack.c.b16 %v211, %v207
    %v260 = vpack.c.b16 %v216, %v212
    %v261 = vpack.c.b16 %v217, %v213
    %v262 = vpack.c.b16 %v218, %v214
    %v263 = vpack.c.b16 %v219, %v215
    %v264 = vpack.c.b16 %v224, %v220
    %v265 = vpack.c.b16 %v225, %v221
    %v266 = vpack.c.b16 %v226, %v222
    %v267 = vpack.c.b16 %v227, %v223
    %v268 = vpack.c.b16 %v232, %v228
    %v269 = vpack.c.b16 %v233, %v229
    %v270 = vpack.c.b16 %v234, %v230
    %v271 = vpack.c.b16 %v235, %v231
    %v272 = vpack.c.b16 %v240, %v236
    %v273 = vpack.c.b16 %v241, %v237
    %v274 = vpack.c.b16 %v242, %v238
    %v275 = vpack.c.b16 %v243, %v239
    %308 = vmatprep.subr.bf16.mxu0 %v245
    %309 = vmatpush1.bf16.msra.mxu0 %v244
    %310 = vmatprep.subr.bf16.mxu0 %v249
    %311 = vmatpush1.bf16.msra.mxu0 %v248
    %312 = vmatprep.subr.bf16.mxu0 %v253
    %313 = vmatpush1.bf16.msra.mxu0 %v252
    %314 = vmatprep.subr.bf16.mxu0 %v257
    %315 = vmatpush1.bf16.msra.mxu0 %v256
    %316 = vmatprep.subr.bf16.mxu0 %v261
    %317 = vmatpush1.bf16.msra.mxu0 %v260
    %318 = vmatprep.subr.bf16.mxu0 %v265
    %319 = vmatpush1.bf16.msra.mxu0 %v264
    %320 = vmatprep.subr.bf16.mxu0 %v269
    %321 = vmatpush1.bf16.msra.mxu0 %v268
    %322 = vmatprep.subr.bf16.mxu0 %v273
    %323 = vmatpush1.bf16.msra.mxu0 %v272
    %324 = vmatprep.subr.bf16.mxu0 0
    %325 = vmatpush1.bf16.msra.mxu0 0
    %326 = vmatprep.subr.bf16.mxu0 0
    %327 = vmatpush1.bf16.msra.mxu0 0
    %328 = vmatprep.subr.bf16.mxu0 0
    %329 = vmatpush1.bf16.msra.mxu0 0
    %330 = vmatprep.subr.bf16.mxu0 0
    %331 = vmatpush1.bf16.msra.mxu0 0
    %332 = vmatprep.subr.bf16.mxu0 0
    %333 = vmatpush1.bf16.msra.mxu0 0
    %334 = vmatprep.subr.bf16.mxu0 0
    %335 = vmatpush1.bf16.msra.mxu0 0
    %336 = vmatprep.subr.bf16.mxu0 0
    %337 = vmatpush1.bf16.msra.mxu0 0
    %338 = vmatprep.subr.bf16.mxu0 0
    %339 = vmatpush1.bf16.msra.mxu0 0
    %340 = vmatprep.mubr.bf16.mxu0 0
    %341 = vmatmul.mubr.bf16.gmra.mrb[0].mxu0 %v147
    %v342 = vpop.f32.mrb[0].mxu0
    %v343 = vadd.f32 0.0, %v342
    %v344 = vpop.f32.mrb[0].mxu0
    %v345 = vadd.f32 0.0, %v344
    %v346 = vpop.f32.mrb[0].mxu0
    %v347 = vpop.f32.mrb[0].mxu0
    %348 = vdwg.mxu0
    %349 = vmatprep.subr.bf16.mxu0 %v247
    %350 = vmatpush1.bf16.msra.mxu0 %v246
    %351 = vmatprep.subr.bf16.mxu0 %v251
    %352 = vmatpush1.bf16.msra.mxu0 %v250
    %353 = vmatprep.subr.bf16.mxu0 %v255
    %354 = vmatpush1.bf16.msra.mxu0 %v254
    %355 = vmatprep.subr.bf16.mxu0 %v259
    %356 = vmatpush1.bf16.msra.mxu0 %v258
    %357 = vmatprep.subr.bf16.mxu0 %v263
    %358 = vmatpush1.bf16.msra.mxu0 %v262
    %359 = vmatprep.subr.bf16.mxu0 %v267
    %360 = vmatpush1.bf16.msra.mxu0 %v266
    %361 = vmatprep.subr.bf16.mxu0 %v271
    %362 = vmatpush1.bf16.msra.mxu0 %v270
    %363 = vmatprep.subr.bf16.mxu0 %v275
    %364 = vmatpush1.bf16.msra.mxu0 %v274
    %365 = vmatprep.subr.bf16.mxu0 0
    %366 = vmatpush1.bf16.msra.mxu0 0
    %367 = vmatprep.subr.bf16.mxu0 0
    %368 = vmatpush1.bf16.msra.mxu0 0
    %369 = vmatprep.subr.bf16.mxu0 0
    %370 = vmatpush1.bf16.msra.mxu0 0
    %371 = vmatprep.subr.bf16.mxu0 0
    %372 = vmatpush1.bf16.msra.mxu0 0
    %373 = vmatprep.subr.bf16.mxu0 0
    %374 = vmatpush1.bf16.msra.mxu0 0
    %375 = vmatprep.subr.bf16.mxu0 0
    %376 = vmatpush1.bf16.msra.mxu0 0
    %377 = vmatprep.subr.bf16.mxu0 0
    %378 = vmatpush1.bf16.msra.mxu0 0
    %379 = vmatprep.subr.bf16.mxu0 0
    %380 = vmatpush1.bf16.msra.mxu0 0
    %381 = vmatprep.mubr.bf16.mxu0 0
    %382 = vmatmul.mubr.bf16.gmra.mrb[0].mxu0 %v147
    %v383 = vpop.f32.mrb[0].mxu0
    %v384 = vadd.f32 0.0, %v383
    %v385 = vpop.f32.mrb[0].mxu0
    %v386 = vadd.f32 0.0, %v385
    %v387 = vpop.f32.mrb[0].mxu0
    %v388 = vpop.f32.mrb[0].mxu0
    %389 = vdwg.mxu0
    %v394 = vcombine.low %v343, %v345
    %v395 = vcombine.low %v384, %v386
    %v397 = vunpack.c.l.s4 1966171168
    %v398 = vunpack.c.0.s8 %v397
    %v399 = vlaneseq
    %v400 = vshrl.u32 %v399, 7
    %v401 = vsub.s32 %v398, %v400
    %v402 = vrot.slane %v394, %v401
    %v404 = vunpack.c.l.s4 1966171168
    %v405 = vunpack.c.0.s8 %v404
    %v406 = vlaneseq
    %v407 = vshrl.u32 %v406, 7
    %v408 = vsub.s32 %v405, %v407
    %v409 = vrot.slane %v395, %v408
    %v410 = vcombine.low %v402, %v409
    %v412 = vunpack.c.l.s4 1966171168
    %v413 = vunpack.c.0.s8 %v412
    %v414 = vlaneseq
    %v415 = vshrl.u32 %v414, 7
    %v416 = vsub.s32 %v413, %v415
    %v417 = vrot.slane %v410, %v416
    %v419 = vadd.f32 %v146, %v417
    %v420 = vtanh.pop %v419
    %v421 = vmul.f32 %v420, 0.5
    %v422 = vadd.f32 %v421, 0.5
    %v424 = vrot.slane %v420, 1
    %v426 = vmul.f32 %v424, 0.5
    %v427 = vadd.f32 %v426, 0.5
    %v428 = vrot.slane %v420, 3
    %v430 = vmul.f32 %v428, 0.5
    %v431 = vadd.f32 %v430, 0.5
    %v432 = vmul.f32 %v427, %v145
    %v433 = vrot.slane %v420, 2
    %v435 = vmul.f32 %v422, %v433
    %v436 = vadd.f32 %v432, %v435
    %v437 = vtanh.pop %v436
    %v438 = vmul.f32 %v431, %v437
    %s439 = scalar_lea.vmem [#allocation2], 1
    %v440 = vld [vmem:[%s439] ss:$8 sm:$0xf]
    %v441 = vpack.c.bf16 %v438, %v438
    %442 = vmatprep.subr.bf16.mxu0 %v245
    %443 = vmatpush1.bf16.msra.mxu0 %v244
    %444 = vmatprep.subr.bf16.mxu0 %v249
    %445 = vmatpush1.bf16.msra.mxu0 %v248
    %446 = vmatprep.subr.bf16.mxu0 %v253
    %447 = vmatpush1.bf16.msra.mxu0 %v252
    %448 = vmatprep.subr.bf16.mxu0 %v257
    %449 = vmatpush1.bf16.msra.mxu0 %v256
    %450 = vmatprep.subr.bf16.mxu0 %v261
    %451 = vmatpush1.bf16.msra.mxu0 %v260
    %452 = vmatprep.subr.bf16.mxu0 %v265
    %453 = vmatpush1.bf16.msra.mxu0 %v264
    %454 = vmatprep.subr.bf16.mxu0 %v269
    %455 = vmatpush1.bf16.msra.mxu0 %v268
    %456 = vmatprep.subr.bf16.mxu0 %v273
    %457 = vmatpush1.bf16.msra.mxu0 %v272
    %458 = vmatprep.subr.bf16.mxu0 0
    %459 = vmatpush1.bf16.msra.mxu0 0
    %460 = vmatprep.subr.bf16.mxu0 0
    %461 = vmatpush1.bf16.msra.mxu0 0
    %462 = vmatprep.subr.bf16.mxu0 0
    %463 = vmatpush1.bf16.msra.mxu0 0
    %464 = vmatprep.subr.bf16.mxu0 0
    %465 = vmatpush1.bf16.msra.mxu0 0
    %466 = vmatprep.subr.bf16.mxu0 0
    %467 = vmatpush1.bf16.msra.mxu0 0
    %468 = vmatprep.subr.bf16.mxu0 0
    %469 = vmatpush1.bf16.msra.mxu0 0
    %470 = vmatprep.subr.bf16.mxu0 0
    %471 = vmatpush1.bf16.msra.mxu0 0
    %472 = vmatprep.subr.bf16.mxu0 0
    %473 = vmatpush1.bf16.msra.mxu0 0
    %474 = vmatprep.mubr.bf16.mxu0 0
    %475 = vmatmul.mubr.bf16.gmra.mrb[0].mxu0 %v441
    %v476 = vpop.f32.mrb[0].mxu0
    %v477 = vadd.f32 0.0, %v476
    %v478 = vpop.f32.mrb[0].mxu0
    %v479 = vadd.f32 0.0, %v478
    %v480 = vpop.f32.mrb[0].mxu0
    %v481 = vpop.f32.mrb[0].mxu0
    %482 = vdwg.mxu0
    %483 = vmatprep.subr.bf16.mxu0 %v247
    %484 = vmatpush1.bf16.msra.mxu0 %v246
    %485 = vmatprep.subr.bf16.mxu0 %v251
    %486 = vmatpush1.bf16.msra.mxu0 %v250
    %487 = vmatprep.subr.bf16.mxu0 %v255
    %488 = vmatpush1.bf16.msra.mxu0 %v254
    %489 = vmatprep.subr.bf16.mxu0 %v259
    %490 = vmatpush1.bf16.msra.mxu0 %v258
    %491 = vmatprep.subr.bf16.mxu0 %v263
    %492 = vmatpush1.bf16.msra.mxu0 %v262
    %493 = vmatprep.subr.bf16.mxu0 %v267
    %494 = vmatpush1.bf16.msra.mxu0 %v266
    %495 = vmatprep.subr.bf16.mxu0 %v271
    %496 = vmatpush1.bf16.msra.mxu0 %v270
    %497 = vmatprep.subr.bf16.mxu0 %v275
    %498 = vmatpush1.bf16.msra.mxu0 %v274
    %499 = vmatprep.subr.bf16.mxu0 0
    %500 = vmatpush1.bf16.msra.mxu0 0
    %501 = vmatprep.subr.bf16.mxu0 0
    %502 = vmatpush1.bf16.msra.mxu0 0
    %503 = vmatprep.subr.bf16.mxu0 0
    %504 = vmatpush1.bf16.msra.mxu0 0
    %505 = vmatprep.subr.bf16.mxu0 0
    %506 = vmatpush1.bf16.msra.mxu0 0
    %507 = vmatprep.subr.bf16.mxu0 0
    %508 = vmatpush1.bf16.msra.mxu0 0
    %509 = vmatprep.subr.bf16.mxu0 0
    %510 = vmatpush1.bf16.msra.mxu0 0
    %511 = vmatprep.subr.bf16.mxu0 0
    %512 = vmatpush1.bf16.msra.mxu0 0
    %513 = vmatprep.subr.bf16.mxu0 0
    %514 = vmatpush1.bf16.msra.mxu0 0
    %515 = vmatprep.mubr.bf16.mxu0 0
    %516 = vmatmul.mubr.bf16.gmra.mrb[0].mxu0 %v441
    %v517 = vpop.f32.mrb[0].mxu0
    %v518 = vadd.f32 0.0, %v517
    %v519 = vpop.f32.mrb[0].mxu0
    %v520 = vadd.f32 0.0, %v519
    %v521 = vpop.f32.mrb[0].mxu0
    %v522 = vpop.f32.mrb[0].mxu0
    %523 = vdwg.mxu0
    %v528 = vcombine.low %v477, %v479
    %v529 = vcombine.low %v518, %v520
    %v531 = vunpack.c.l.s4 1966171168
    %v532 = vunpack.c.0.s8 %v531
    %v533 = vlaneseq
    %v534 = vshrl.u32 %v533, 7
    %v535 = vsub.s32 %v532, %v534
    %v536 = vrot.slane %v528, %v535
    %v538 = vunpack.c.l.s4 1966171168
    %v539 = vunpack.c.0.s8 %v538
    %v540 = vlaneseq
    %v541 = vshrl.u32 %v540, 7
    %v542 = vsub.s32 %v539, %v541
    %v543 = vrot.slane %v529, %v542
    %v544 = vcombine.low %v536, %v543
    %v546 = vunpack.c.l.s4 1966171168
    %v547 = vunpack.c.0.s8 %v546
    %v548 = vlaneseq
    %v549 = vshrl.u32 %v548, 7
    %v550 = vsub.s32 %v547, %v549
    %v551 = vrot.slane %v544, %v550
    %v553 = vadd.f32 %v440, %v551
    %v554 = vtanh.pop %v553
    %v555 = vmul.f32 %v554, 0.5
    %v556 = vadd.f32 %v555, 0.5
    %v558 = vrot.slane %v554, 1
    %v560 = vmul.f32 %v558, 0.5
    %v561 = vadd.f32 %v560, 0.5
    %v562 = vrot.slane %v554, 3
    %v564 = vmul.f32 %v562, 0.5
    %v565 = vadd.f32 %v564, 0.5
    %v566 = vmul.f32 %v561, %v436
    %v567 = vrot.slane %v554, 2
    %v569 = vmul.f32 %v556, %v567
    %v570 = vadd.f32 %v566, %v569
    %v571 = vtanh.pop %v570
    %v572 = vmul.f32 %v565, %v571
    %s573 = scalar_lea.vmem [#allocation2], 2
    %v574 = vld [vmem:[%s573] ss:$8 sm:$0xf]
    %v575 = vpack.c.bf16 %v572, %v572
    %576 = vmatprep.subr.bf16.mxu0 %v245
    %577 = vmatpush1.bf16.msra.mxu0 %v244
    %578 = vmatprep.subr.bf16.mxu0 %v249
    %579 = vmatpush1.bf16.msra.mxu0 %v248
    %580 = vmatprep.subr.bf16.mxu0 %v253
    %581 = vmatpush1.bf16.msra.mxu0 %v252
    %582 = vmatprep.subr.bf16.mxu0 %v257
    %583 = vmatpush1.bf16.msra.mxu0 %v256
    %584 = vmatprep.subr.bf16.mxu0 %v261
    %585 = vmatpush1.bf16.msra.mxu0 %v260
    %586 = vmatprep.subr.bf16.mxu0 %v265
    %587 = vmatpush1.bf16.msra.mxu0 %v264
    %588 = vmatprep.subr.bf16.mxu0 %v269
    %589 = vmatpush1.bf16.msra.mxu0 %v268
    %590 = vmatprep.subr.bf16.mxu0 %v273
    %591 = vmatpush1.bf16.msra.mxu0 %v272
    %592 = vmatprep.subr.bf16.mxu0 0
    %593 = vmatpush1.bf16.msra.mxu0 0
    %594 = vmatprep.subr.bf16.mxu0 0
    %595 = vmatpush1.bf16.msra.mxu0 0
    %596 = vmatprep.subr.bf16.mxu0 0
    %597 = vmatpush1.bf16.msra.mxu0 0
    %598 = vmatprep.subr.bf16.mxu0 0
    %599 = vmatpush1.bf16.msra.mxu0 0
    %600 = vmatprep.subr.bf16.mxu0 0
    %601 = vmatpush1.bf16.msra.mxu0 0
    %602 = vmatprep.subr.bf16.mxu0 0
    %603 = vmatpush1.bf16.msra.mxu0 0
    %604 = vmatprep.subr.bf16.mxu0 0
    %605 = vmatpush1.bf16.msra.mxu0 0
    %606 = vmatprep.subr.bf16.mxu0 0
    %607 = vmatpush1.bf16.msra.mxu0 0
    %608 = vmatprep.mubr.bf16.mxu0 0
    %609 = vmatmul.mubr.bf16.gmra.mrb[0].mxu0 %v575
    %v610 = vpop.f32.mrb[0].mxu0
    %v611 = vadd.f32 0.0, %v610
    %v612 = vpop.f32.mrb[0].mxu0
    %v613 = vadd.f32 0.0, %v612
    %v614 = vpop.f32.mrb[0].mxu0
    %v615 = vpop.f32.mrb[0].mxu0
    %616 = vdwg.mxu0
    %617 = vmatprep.subr.bf16.mxu0 %v247
    %618 = vmatpush1.bf16.msra.mxu0 %v246
    %619 = vmatprep.subr.bf16.mxu0 %v251
    %620 = vmatpush1.bf16.msra.mxu0 %v250
    %621 = vmatprep.subr.bf16.mxu0 %v255
    %622 = vmatpush1.bf16.msra.mxu0 %v254
    %623 = vmatprep.subr.bf16.mxu0 %v259
    %624 = vmatpush1.bf16.msra.mxu0 %v258
    %625 = vmatprep.subr.bf16.mxu0 %v263
    %626 = vmatpush1.bf16.msra.mxu0 %v262
    %627 = vmatprep.subr.bf16.mxu0 %v267
    %628 = vmatpush1.bf16.msra.mxu0 %v266
    %629 = vmatprep.subr.bf16.mxu0 %v271
    %630 = vmatpush1.bf16.msra.mxu0 %v270
    %631 = vmatprep.subr.bf16.mxu0 %v275
    %632 = vmatpush1.bf16.msra.mxu0 %v274
    %633 = vmatprep.subr.bf16.mxu0 0
    %634 = vmatpush1.bf16.msra.mxu0 0
    %635 = vmatprep.subr.bf16.mxu0 0
    %636 = vmatpush1.bf16.msra.mxu0 0
    %637 = vmatprep.subr.bf16.mxu0 0
    %638 = vmatpush1.bf16.msra.mxu0 0
    %639 = vmatprep.subr.bf16.mxu0 0
    %640 = vmatpush1.bf16.msra.mxu0 0
    %641 = vmatprep.subr.bf16.mxu0 0
    %642 = vmatpush1.bf16.msra.mxu0 0
    %643 = vmatprep.subr.bf16.mxu0 0
    %644 = vmatpush1.bf16.msra.mxu0 0
    %645 = vmatprep.subr.bf16.mxu0 0
    %646 = vmatpush1.bf16.msra.mxu0 0
    %647 = vmatprep.subr.bf16.mxu0 0
    %648 = vmatpush1.bf16.msra.mxu0 0
    %649 = vmatprep.mubr.bf16.mxu0 0
    %650 = vmatmul.mubr.bf16.gmra.mrb[0].mxu0 %v575
    %v651 = vpop.f32.mrb[0].mxu0
    %v652 = vadd.f32 0.0, %v651
    %v653 = vpop.f32.mrb[0].mxu0
    %v654 = vadd.f32 0.0, %v653
    %v655 = vpop.f32.mrb[0].mxu0
    %v656 = vpop.f32.mrb[0].mxu0
    %657 = vdwg.mxu0
    %v662 = vcombine.low %v611, %v613
    %v663 = vcombine.low %v652, %v654
    %v665 = vunpack.c.l.s4 1966171168
    %v666 = vunpack.c.0.s8 %v665
    %v667 = vlaneseq
    %v668 = vshrl.u32 %v667, 7
    %v669 = vsub.s32 %v666, %v668
    %v670 = vrot.slane %v662, %v669
    %v672 = vunpack.c.l.s4 1966171168
    %v673 = vunpack.c.0.s8 %v672
    %v674 = vlaneseq
    %v675 = vshrl.u32 %v674, 7
    %v676 = vsub.s32 %v673, %v675
    %v677 = vrot.slane %v663, %v676
    %v678 = vcombine.low %v670, %v677
    %v680 = vunpack.c.l.s4 1966171168
    %v681 = vunpack.c.0.s8 %v680
    %v682 = vlaneseq
    %v683 = vshrl.u32 %v682, 7
    %v684 = vsub.s32 %v681, %v683
    %v685 = vrot.slane %v678, %v684
    %v687 = vadd.f32 %v574, %v685
    %v688 = vtanh.pop %v687
    %v689 = vmul.f32 %v688, 0.5
    %v690 = vadd.f32 %v689, 0.5
    %v692 = vrot.slane %v688, 1
    %v694 = vmul.f32 %v692, 0.5
    %v695 = vadd.f32 %v694, 0.5
    %v696 = vrot.slane %v688, 3
    %v698 = vmul.f32 %v696, 0.5
    %v699 = vadd.f32 %v698, 0.5
    %v700 = vmul.f32 %v695, %v570
    %v701 = vrot.slane %v688, 2
    %v703 = vmul.f32 %v690, %v701
    %v704 = vadd.f32 %v700, %v703
    %v705 = vtanh.pop %v704
    %v706 = vmul.f32 %v699, %v705
    %s707 = scalar_lea.vmem [#allocation2], 3
    %v708 = vld [vmem:[%s707] ss:$8 sm:$0xf]
    %v709 = vpack.c.bf16 %v706, %v706
    %710 = vmatprep.subr.bf16.mxu0 %v245
    %711 = vmatpush1.bf16.msra.mxu0 %v244
    %712 = vmatprep.subr.bf16.mxu0 %v249
    %713 = vmatpush1.bf16.msra.mxu0 %v248
    %714 = vmatprep.subr.bf16.mxu0 %v253
    %715 = vmatpush1.bf16.msra.mxu0 %v252
    %716 = vmatprep.subr.bf16.mxu0 %v257
    %717 = vmatpush1.bf16.msra.mxu0 %v256
    %718 = vmatprep.subr.bf16.mxu0 %v261
    %719 = vmatpush1.bf16.msra.mxu0 %v260
    %720 = vmatprep.subr.bf16.mxu0 %v265
    %721 = vmatpush1.bf16.msra.mxu0 %v264
    %722 = vmatprep.subr.bf16.mxu0 %v269
    %723 = vmatpush1.bf16.msra.mxu0 %v268
    %724 = vmatprep.subr.bf16.mxu0 %v273
    %725 = vmatpush1.bf16.msra.mxu0 %v272
    %726 = vmatprep.subr.bf16.mxu0 0
    %727 = vmatpush1.bf16.msra.mxu0 0
    %728 = vmatprep.subr.bf16.mxu0 0
    %729 = vmatpush1.bf16.msra.mxu0 0
    %730 = vmatprep.subr.bf16.mxu0 0
    %731 = vmatpush1.bf16.msra.mxu0 0
    %732 = vmatprep.subr.bf16.mxu0 0
    %733 = vmatpush1.bf16.msra.mxu0 0
    %734 = vmatprep.subr.bf16.mxu0 0
    %735 = vmatpush1.bf16.msra.mxu0 0
    %736 = vmatprep.subr.bf16.mxu0 0
    %737 = vmatpush1.bf16.msra.mxu0 0
    %738 = vmatprep.subr.bf16.mxu0 0
    %739 = vmatpush1.bf16.msra.mxu0 0
    %740 = vmatprep.subr.bf16.mxu0 0
    %741 = vmatpush1.bf16.msra.mxu0 0
    %742 = vmatprep.mubr.bf16.mxu0 0
    %743 = vmatmul.mubr.bf16.gmra.mrb[0].mxu0 %v709
    %v744 = vpop.f32.mrb[0].mxu0
    %v745 = vadd.f32 0.0, %v744
    %v746 = vpop.f32.mrb[0].mxu0
    %v747 = vadd.f32 0.0, %v746
    %v748 = vpop.f32.mrb[0].mxu0
    %v749 = vpop.f32.mrb[0].mxu0
    %750 = vdwg.mxu0
    %751 = vmatprep.subr.bf16.mxu0 %v247
    %752 = vmatpush1.bf16.msra.mxu0 %v246
    %753 = vmatprep.subr.bf16.mxu0 %v251
    %754 = vmatpush1.bf16.msra.mxu0 %v250
    %755 = vmatprep.subr.bf16.mxu0 %v255
    %756 = vmatpush1.bf16.msra.mxu0 %v254
    %757 = vmatprep.subr.bf16.mxu0 %v259
    %758 = vmatpush1.bf16.msra.mxu0 %v258
    %759 = vmatprep.subr.bf16.mxu0 %v263
    %760 = vmatpush1.bf16.msra.mxu0 %v262
    %761 = vmatprep.subr.bf16.mxu0 %v267
    %762 = vmatpush1.bf16.msra.mxu0 %v266
    %763 = vmatprep.subr.bf16.mxu0 %v271
    %764 = vmatpush1.bf16.msra.mxu0 %v270
    %765 = vmatprep.subr.bf16.mxu0 %v275
    %766 = vmatpush1.bf16.msra.mxu0 %v274
    %767 = vmatprep.subr.bf16.mxu0 0
    %768 = vmatpush1.bf16.msra.mxu0 0
    %769 = vmatprep.subr.bf16.mxu0 0
    %770 = vmatpush1.bf16.msra.mxu0 0
    %771 = vmatprep.subr.bf16.mxu0 0
    %772 = vmatpush1.bf16.msra.mxu0 0
    %773 = vmatprep.subr.bf16.mxu0 0
    %774 = vmatpush1.bf16.msra.mxu0 0
    %775 = vmatprep.subr.bf16.mxu0 0
    %776 = vmatpush1.bf16.msra.mxu0 0
    %777 = vmatprep.subr.bf16.mxu0 0
    %778 = vmatpush1.bf16.msra.mxu0 0
    %779 = vmatprep.subr.bf16.mxu0 0
    %780 = vmatpush1.bf16.msra.mxu0 0
    %781 = vmatprep.subr.bf16.mxu0 0
    %782 = vmatpush1.bf16.msra.mxu0 0
    %783 = vmatprep.mubr.bf16.mxu0 0
    %784 = vmatmul.mubr.bf16.gmra.mrb[0].mxu0 %v709
    %v785 = vpop.f32.mrb[0].mxu0
    %v786 = vadd.f32 0.0, %v785
    %v787 = vpop.f32.mrb[0].mxu0
    %v788 = vadd.f32 0.0, %v787
    %v789 = vpop.f32.mrb[0].mxu0
    %v790 = vpop.f32.mrb[0].mxu0
    %791 = vdwg.mxu0
    %v796 = vcombine.low %v745, %v747
    %v797 = vcombine.low %v786, %v788
    %v799 = vunpack.c.l.s4 1966171168
    %v800 = vunpack.c.0.s8 %v799
    %v801 = vlaneseq
    %v802 = vshrl.u32 %v801, 7
    %v803 = vsub.s32 %v800, %v802
    %v804 = vrot.slane %v796, %v803
    %v806 = vunpack.c.l.s4 1966171168
    %v807 = vunpack.c.0.s8 %v806
    %v808 = vlaneseq
    %v809 = vshrl.u32 %v808, 7
    %v810 = vsub.s32 %v807, %v809
    %v811 = vrot.slane %v797, %v810
    %v812 = vcombine.low %v804, %v811
    %v814 = vunpack.c.l.s4 1966171168
    %v815 = vunpack.c.0.s8 %v814
    %v816 = vlaneseq
    %v817 = vshrl.u32 %v816, 7
    %v818 = vsub.s32 %v815, %v817
    %v819 = vrot.slane %v812, %v818
    %v821 = vadd.f32 %v708, %v819
    %v822 = vtanh.pop %v821
    %v823 = vmul.f32 %v822, 0.5
    %v824 = vadd.f32 %v823, 0.5
    %v826 = vrot.slane %v822, 1
    %v828 = vmul.f32 %v826, 0.5
    %v829 = vadd.f32 %v828, 0.5
    %v830 = vrot.slane %v822, 3
    %v832 = vmul.f32 %v830, 0.5
    %v833 = vadd.f32 %v832, 0.5
    %v834 = vmul.f32 %v829, %v704
    %v835 = vrot.slane %v822, 2
    %v837 = vmul.f32 %v824, %v835
    %v838 = vadd.f32 %v834, %v837
    %v839 = vtanh.pop %v838
    %v840 = vmul.f32 %v833, %v839
    %s841 = scalar_lea.vmem [#allocation2], 4
    %v842 = vld [vmem:[%s841] ss:$8 sm:$0xf]
    %v843 = vpack.c.bf16 %v840, %v840
    %844 = vmatprep.subr.bf16.mxu0 %v245
    %845 = vmatpush1.bf16.msra.mxu0 %v244
    %846 = vmatprep.subr.bf16.mxu0 %v249
    %847 = vmatpush1.bf16.msra.mxu0 %v248
    %848 = vmatprep.subr.bf16.mxu0 %v253
    %849 = vmatpush1.bf16.msra.mxu0 %v252
    %850 = vmatprep.subr.bf16.mxu0 %v257
    %851 = vmatpush1.bf16.msra.mxu0 %v256
    %852 = vmatprep.subr.bf16.mxu0 %v261
    %853 = vmatpush1.bf16.msra.mxu0 %v260
    %854 = vmatprep.subr.bf16.mxu0 %v265
    %855 = vmatpush1.bf16.msra.mxu0 %v264
    %856 = vmatprep.subr.bf16.mxu0 %v269
    %857 = vmatpush1.bf16.msra.mxu0 %v268
    %858 = vmatprep.subr.bf16.mxu0 %v273
    %859 = vmatpush1.bf16.msra.mxu0 %v272
    %860 = vmatprep.subr.bf16.mxu0 0
    %861 = vmatpush1.bf16.msra.mxu0 0
    %862 = vmatprep.subr.bf16.mxu0 0
    %863 = vmatpush1.bf16.msra.mxu0 0
    %864 = vmatprep.subr.bf16.mxu0 0
    %865 = vmatpush1.bf16.msra.mxu0 0
    %866 = vmatprep.subr.bf16.mxu0 0
    %867 = vmatpush1.bf16.msra.mxu0 0
    %868 = vmatprep.subr.bf16.mxu0 0
    %869 = vmatpush1.bf16.msra.mxu0 0
    %870 = vmatprep.subr.bf16.mxu0 0
    %871 = vmatpush1.bf16.msra.mxu0 0
    %872 = vmatprep.subr.bf16.mxu0 0
    %873 = vmatpush1.bf16.msra.mxu0 0
    %874 = vmatprep.subr.bf16.mxu0 0
    %875 = vmatpush1.bf16.msra.mxu0 0
    %876 = vmatprep.mubr.bf16.mxu0 0
    %877 = vmatmul.mubr.bf16.gmra.mrb[0].mxu0 %v843
    %v878 = vpop.f32.mrb[0].mxu0
    %v879 = vadd.f32 0.0, %v878
    %v880 = vpop.f32.mrb[0].mxu0
    %v881 = vadd.f32 0.0, %v880
    %v882 = vpop.f32.mrb[0].mxu0
    %v883 = vpop.f32.mrb[0].mxu0
    %884 = vdwg.mxu0
    %885 = vmatprep.subr.bf16.mxu0 %v247
    %886 = vmatpush1.bf16.msra.mxu0 %v246
    %887 = vmatprep.subr.bf16.mxu0 %v251
    %888 = vmatpush1.bf16.msra.mxu0 %v250
    %889 = vmatprep.subr.bf16.mxu0 %v255
    %890 = vmatpush1.bf16.msra.mxu0 %v254
    %891 = vmatprep.subr.bf16.mxu0 %v259
    %892 = vmatpush1.bf16.msra.mxu0 %v258
    %893 = vmatprep.subr.bf16.mxu0 %v263
    %894 = vmatpush1.bf16.msra.mxu0 %v262
    %895 = vmatprep.subr.bf16.mxu0 %v267
    %896 = vmatpush1.bf16.msra.mxu0 %v266
    %897 = vmatprep.subr.bf16.mxu0 %v271
    %898 = vmatpush1.bf16.msra.mxu0 %v270
    %899 = vmatprep.subr.bf16.mxu0 %v275
    %900 = vmatpush1.bf16.msra.mxu0 %v274
    %901 = vmatprep.subr.bf16.mxu0 0
    %902 = vmatpush1.bf16.msra.mxu0 0
    %903 = vmatprep.subr.bf16.mxu0 0
    %904 = vmatpush1.bf16.msra.mxu0 0
    %905 = vmatprep.subr.bf16.mxu0 0
    %906 = vmatpush1.bf16.msra.mxu0 0
    %907 = vmatprep.subr.bf16.mxu0 0
    %908 = vmatpush1.bf16.msra.mxu0 0
    %909 = vmatprep.subr.bf16.mxu0 0
    %910 = vmatpush1.bf16.msra.mxu0 0
    %911 = vmatprep.subr.bf16.mxu0 0
    %912 = vmatpush1.bf16.msra.mxu0 0
    %913 = vmatprep.subr.bf16.mxu0 0
    %914 = vmatpush1.bf16.msra.mxu0 0
    %915 = vmatprep.subr.bf16.mxu0 0
    %916 = vmatpush1.bf16.msra.mxu0 0
    %917 = vmatprep.mubr.bf16.mxu0 0
    %918 = vmatmul.mubr.bf16.gmra.mrb[0].mxu0 %v843
    %v919 = vpop.f32.mrb[0].mxu0
    %v920 = vadd.f32 0.0, %v919
    %v921 = vpop.f32.mrb[0].mxu0
    %v922 = vadd.f32 0.0, %v921
    %v923 = vpop.f32.mrb[0].mxu0
    %v924 = vpop.f32.mrb[0].mxu0
    %925 = vdwg.mxu0
    %v930 = vcombine.low %v879, %v881
    %v931 = vcombine.low %v920, %v922
    %v933 = vunpack.c.l.s4 1966171168
    %v934 = vunpack.c.0.s8 %v933
    %v935 = vlaneseq
    %v936 = vshrl.u32 %v935, 7
    %v937 = vsub.s32 %v934, %v936
    %v938 = vrot.slane %v930, %v937
    %v940 = vunpack.c.l.s4 1966171168
    %v941 = vunpack.c.0.s8 %v940
    %v942 = vlaneseq
    %v943 = vshrl.u32 %v942, 7
    %v944 = vsub.s32 %v941, %v943
    %v945 = vrot.slane %v931, %v944
    %v946 = vcombine.low %v938, %v945
    %v948 = vunpack.c.l.s4 1966171168
    %v949 = vunpack.c.0.s8 %v948
    %v950 = vlaneseq
    %v951 = vshrl.u32 %v950, 7
    %v952 = vsub.s32 %v949, %v951
    %v953 = vrot.slane %v946, %v952
    %v955 = vadd.f32 %v842, %v953
    %v956 = vtanh.pop %v955
    %v957 = vmul.f32 %v956, 0.5
    %v958 = vadd.f32 %v957, 0.5
    %v960 = vrot.slane %v956, 1
    %v962 = vmul.f32 %v960, 0.5
    %v963 = vadd.f32 %v962, 0.5
    %v964 = vrot.slane %v956, 3
    %v966 = vmul.f32 %v964, 0.5
    %v967 = vadd.f32 %v966, 0.5
    %v968 = vmul.f32 %v963, %v838
    %v969 = vrot.slane %v956, 2
    %v971 = vmul.f32 %v958, %v969
    %v972 = vadd.f32 %v968, %v971
    %v973 = vtanh.pop %v972
    %v974 = vmul.f32 %v967, %v973
    %s975 = scalar_lea.vmem [#allocation2], 5
    %v976 = vld [vmem:[%s975] ss:$8 sm:$0xf]
    %v977 = vpack.c.bf16 %v974, %v974
    %978 = vmatprep.subr.bf16.mxu0 %v245
    %979 = vmatpush1.bf16.msra.mxu0 %v244
    %980 = vmatprep.subr.bf16.mxu0 %v249
    %981 = vmatpush1.bf16.msra.mxu0 %v248
    %982 = vmatprep.subr.bf16.mxu0 %v253
    %983 = vmatpush1.bf16.msra.mxu0 %v252
    %984 = vmatprep.subr.bf16.mxu0 %v257
    %985 = vmatpush1.bf16.msra.mxu0 %v256
    %986 = vmatprep.subr.bf16.mxu0 %v261
    %987 = vmatpush1.bf16.msra.mxu0 %v260
    %988 = vmatprep.subr.bf16.mxu0 %v265
    %989 = vmatpush1.bf16.msra.mxu0 %v264
    %990 = vmatprep.subr.bf16.mxu0 %v269
    %991 = vmatpush1.bf16.msra.mxu0 %v268
    %992 = vmatprep.subr.bf16.mxu0 %v273
    %993 = vmatpush1.bf16.msra.mxu0 %v272
    %994 = vmatprep.subr.bf16.mxu0 0
    %995 = vmatpush1.bf16.msra.mxu0 0
    %996 = vmatprep.subr.bf16.mxu0 0
    %997 = vmatpush1.bf16.msra.mxu0 0
    %998 = vmatprep.subr.bf16.mxu0 0
    %999 = vmatpush1.bf16.msra.mxu0 0
    %1000 = vmatprep.subr.bf16.mxu0 0
    %1001 = vmatpush1.bf16.msra.mxu0 0
    %1002 = vmatprep.subr.bf16.mxu0 0
    %1003 = vmatpush1.bf16.msra.mxu0 0
    %1004 = vmatprep.subr.bf16.mxu0 0
    %1005 = vmatpush1.bf16.msra.mxu0 0
    %1006 = vmatprep.subr.bf16.mxu0 0
    %1007 = vmatpush1.bf16.msra.mxu0 0
    %1008 = vmatprep.subr.bf16.mxu0 0
    %1009 = vmatpush1.bf16.msra.mxu0 0
    %1010 = vmatprep.mubr.bf16.mxu0 0
    %1011 = vmatmul.mubr.bf16.gmra.mrb[0].mxu0 %v977
    %v1012 = vpop.f32.mrb[0].mxu0
    %v1013 = vadd.f32 0.0, %v1012
    %v1014 = vpop.f32.mrb[0].mxu0
    %v1015 = vadd.f32 0.0, %v1014
    %v1016 = vpop.f32.mrb[0].mxu0
    %v1017 = vpop.f32.mrb[0].mxu0
    %1018 = vdwg.mxu0
    %1019 = vmatprep.subr.bf16.mxu0 %v247
    %1020 = vmatpush1.bf16.msra.mxu0 %v246
    %1021 = vmatprep.subr.bf16.mxu0 %v251
    %1022 = vmatpush1.bf16.msra.mxu0 %v250
    %1023 = vmatprep.subr.bf16.mxu0 %v255
    %1024 = vmatpush1.bf16.msra.mxu0 %v254
    %1025 = vmatprep.subr.bf16.mxu0 %v259
    %1026 = vmatpush1.bf16.msra.mxu0 %v258
    %1027 = vmatprep.subr.bf16.mxu0 %v263
    %1028 = vmatpush1.bf16.msra.mxu0 %v262
    %1029 = vmatprep.subr.bf16.mxu0 %v267
    %1030 = vmatpush1.bf16.msra.mxu0 %v266
    %1031 = vmatprep.subr.bf16.mxu0 %v271
    %1032 = vmatpush1.bf16.msra.mxu0 %v270
    %1033 = vmatprep.subr.bf16.mxu0 %v275
    %1034 = vmatpush1.bf16.msra.mxu0 %v274
    %1035 = vmatprep.subr.bf16.mxu0 0
    %1036 = vmatpush1.bf16.msra.mxu0 0
    %1037 = vmatprep.subr.bf16.mxu0 0
    %1038 = vmatpush1.bf16.msra.mxu0 0
    %1039 = vmatprep.subr.bf16.mxu0 0
    %1040 = vmatpush1.bf16.msra.mxu0 0
    %1041 = vmatprep.subr.bf16.mxu0 0
    %1042 = vmatpush1.bf16.msra.mxu0 0
    %1043 = vmatprep.subr.bf16.mxu0 0
    %1044 = vmatpush1.bf16.msra.mxu0 0
    %1045 = vmatprep.subr.bf16.mxu0 0
    %1046 = vmatpush1.bf16.msra.mxu0 0
    %1047 = vmatprep.subr.bf16.mxu0 0
    %1048 = vmatpush1.bf16.msra.mxu0 0
    %1049 = vmatprep.subr.bf16.mxu0 0
    %1050 = vmatpush1.bf16.msra.mxu0 0
    %1051 = vmatprep.mubr.bf16.mxu0 0
    %1052 = vmatmul.mubr.bf16.gmra.mrb[0].mxu0 %v977
    %v1053 = vpop.f32.mrb[0].mxu0
    %v1054 = vadd.f32 0.0, %v1053
    %v1055 = vpop.f32.mrb[0].mxu0
    %v1056 = vadd.f32 0.0, %v1055
    %v1057 = vpop.f32.mrb[0].mxu0
    %v1058 = vpop.f32.mrb[0].mxu0
    %1059 = vdwg.mxu0
    %v1064 = vcombine.low %v1013, %v1015
    %v1065 = vcombine.low %v1054, %v1056
    %v1067 = vunpack.c.l.s4 1966171168
    %v1068 = vunpack.c.0.s8 %v1067
    %v1069 = vlaneseq
    %v1070 = vshrl.u32 %v1069, 7
    %v1071 = vsub.s32 %v1068, %v1070
    %v1072 = vrot.slane %v1064, %v1071
    %v1074 = vunpack.c.l.s4 1966171168
    %v1075 = vunpack.c.0.s8 %v1074
    %v1076 = vlaneseq
    %v1077 = vshrl.u32 %v1076, 7
    %v1078 = vsub.s32 %v1075, %v1077
    %v1079 = vrot.slane %v1065, %v1078
    %v1080 = vcombine.low %v1072, %v1079
    %v1082 = vunpack.c.l.s4 1966171168
    %v1083 = vunpack.c.0.s8 %v1082
    %v1084 = vlaneseq
    %v1085 = vshrl.u32 %v1084, 7
    %v1086 = vsub.s32 %v1083, %v1085
    %v1087 = vrot.slane %v1080, %v1086
    %v1089 = vadd.f32 %v976, %v1087
    %v1090 = vtanh.pop %v1089
    %v1091 = vmul.f32 %v1090, 0.5
    %v1092 = vadd.f32 %v1091, 0.5
    %v1094 = vrot.slane %v1090, 1
    %v1096 = vmul.f32 %v1094, 0.5
    %v1097 = vadd.f32 %v1096, 0.5
    %v1098 = vrot.slane %v1090, 3
    %v1100 = vmul.f32 %v1098, 0.5
    %v1101 = vadd.f32 %v1100, 0.5
    %v1102 = vmul.f32 %v1097, %v972
    %v1103 = vrot.slane %v1090, 2
    %v1105 = vmul.f32 %v1092, %v1103
    %v1106 = vadd.f32 %v1102, %v1105
    %v1107 = vtanh.pop %v1106
    %v1108 = vmul.f32 %v1101, %v1107
    %s1109 = scalar_lea.vmem [#allocation2], 6
    %v1110 = vld [vmem:[%s1109] ss:$8 sm:$0xf]
    %v1111 = vpack.c.bf16 %v1108, %v1108
    %1112 = vmatprep.subr.bf16.mxu0 %v245
    %1113 = vmatpush1.bf16.msra.mxu0 %v244
    %1114 = vmatprep.subr.bf16.mxu0 %v249
    %1115 = vmatpush1.bf16.msra.mxu0 %v248
    %1116 = vmatprep.subr.bf16.mxu0 %v253
    %1117 = vmatpush1.bf16.msra.mxu0 %v252
    %1118 = vmatprep.subr.bf16.mxu0 %v257
    %1119 = vmatpush1.bf16.msra.mxu0 %v256
    %1120 = vmatprep.subr.bf16.mxu0 %v261
    %1121 = vmatpush1.bf16.msra.mxu0 %v260
    %1122 = vmatprep.subr.bf16.mxu0 %v265
    %1123 = vmatpush1.bf16.msra.mxu0 %v264
    %1124 = vmatprep.subr.bf16.mxu0 %v269
    %1125 = vmatpush1.bf16.msra.mxu0 %v268
    %1126 = vmatprep.subr.bf16.mxu0 %v273
    %1127 = vmatpush1.bf16.msra.mxu0 %v272
    %1128 = vmatprep.subr.bf16.mxu0 0
    %1129 = vmatpush1.bf16.msra.mxu0 0
    %1130 = vmatprep.subr.bf16.mxu0 0
    %1131 = vmatpush1.bf16.msra.mxu0 0
    %1132 = vmatprep.subr.bf16.mxu0 0
    %1133 = vmatpush1.bf16.msra.mxu0 0
    %1134 = vmatprep.subr.bf16.mxu0 0
    %1135 = vmatpush1.bf16.msra.mxu0 0
    %1136 = vmatprep.subr.bf16.mxu0 0
    %1137 = vmatpush1.bf16.msra.mxu0 0
    %1138 = vmatprep.subr.bf16.mxu0 0
    %1139 = vmatpush1.bf16.msra.mxu0 0
    %1140 = vmatprep.subr.bf16.mxu0 0
    %1141 = vmatpush1.bf16.msra.mxu0 0
    %1142 = vmatprep.subr.bf16.mxu0 0
    %1143 = vmatpush1.bf16.msra.mxu0 0
    %1144 = vmatprep.mubr.bf16.mxu0 0
    %1145 = vmatmul.mubr.bf16.gmra.mrb[0].mxu0 %v1111
    %v1146 = vpop.f32.mrb[0].mxu0
    %v1147 = vadd.f32 0.0, %v1146
    %v1148 = vpop.f32.mrb[0].mxu0
    %v1149 = vadd.f32 0.0, %v1148
    %v1150 = vpop.f32.mrb[0].mxu0
    %v1151 = vpop.f32.mrb[0].mxu0
    %1152 = vdwg.mxu0
    %1153 = vmatprep.subr.bf16.mxu0 %v247
    %1154 = vmatpush1.bf16.msra.mxu0 %v246
    %1155 = vmatprep.subr.bf16.mxu0 %v251
    %1156 = vmatpush1.bf16.msra.mxu0 %v250
    %1157 = vmatprep.subr.bf16.mxu0 %v255
    %1158 = vmatpush1.bf16.msra.mxu0 %v254
    %1159 = vmatprep.subr.bf16.mxu0 %v259
    %1160 = vmatpush1.bf16.msra.mxu0 %v258
    %1161 = vmatprep.subr.bf16.mxu0 %v263
    %1162 = vmatpush1.bf16.msra.mxu0 %v262
    %1163 = vmatprep.subr.bf16.mxu0 %v267
    %1164 = vmatpush1.bf16.msra.mxu0 %v266
    %1165 = vmatprep.subr.bf16.mxu0 %v271
    %1166 = vmatpush1.bf16.msra.mxu0 %v270
    %1167 = vmatprep.subr.bf16.mxu0 %v275
    %1168 = vmatpush1.bf16.msra.mxu0 %v274
    %1169 = vmatprep.subr.bf16.mxu0 0
    %1170 = vmatpush1.bf16.msra.mxu0 0
    %1171 = vmatprep.subr.bf16.mxu0 0
    %1172 = vmatpush1.bf16.msra.mxu0 0
    %1173 = vmatprep.subr.bf16.mxu0 0
    %1174 = vmatpush1.bf16.msra.mxu0 0
    %1175 = vmatprep.subr.bf16.mxu0 0
    %1176 = vmatpush1.bf16.msra.mxu0 0
    %1177 = vmatprep.subr.bf16.mxu0 0
    %1178 = vmatpush1.bf16.msra.mxu0 0
    %1179 = vmatprep.subr.bf16.mxu0 0
    %1180 = vmatpush1.bf16.msra.mxu0 0
    %1181 = vmatprep.subr.bf16.mxu0 0
    %1182 = vmatpush1.bf16.msra.mxu0 0
    %1183 = vmatprep.subr.bf16.mxu0 0
    %1184 = vmatpush1.bf16.msra.mxu0 0
    %1185 = vmatprep.mubr.bf16.mxu0 0
    %1186 = vmatmul.mubr.bf16.gmra.mrb[0].mxu0 %v1111
    %v1187 = vpop.f32.mrb[0].mxu0
    %v1188 = vadd.f32 0.0, %v1187
    %v1189 = vpop.f32.mrb[0].mxu0
    %v1190 = vadd.f32 0.0, %v1189
    %v1191 = vpop.f32.mrb[0].mxu0
    %v1192 = vpop.f32.mrb[0].mxu0
    %1193 = vdwg.mxu0
    %v1198 = vcombine.low %v1147, %v1149
    %v1199 = vcombine.low %v1188, %v1190
    %v1201 = vunpack.c.l.s4 1966171168
    %v1202 = vunpack.c.0.s8 %v1201
    %v1203 = vlaneseq
    %v1204 = vshrl.u32 %v1203, 7
    %v1205 = vsub.s32 %v1202, %v1204
    %v1206 = vrot.slane %v1198, %v1205
    %v1208 = vunpack.c.l.s4 1966171168
    %v1209 = vunpack.c.0.s8 %v1208
    %v1210 = vlaneseq
    %v1211 = vshrl.u32 %v1210, 7
    %v1212 = vsub.s32 %v1209, %v1211
    %v1213 = vrot.slane %v1199, %v1212
    %v1214 = vcombine.low %v1206, %v1213
    %v1216 = vunpack.c.l.s4 1966171168
    %v1217 = vunpack.c.0.s8 %v1216
    %v1218 = vlaneseq
    %v1219 = vshrl.u32 %v1218, 7
    %v1220 = vsub.s32 %v1217, %v1219
    %v1221 = vrot.slane %v1214, %v1220
    %v1223 = vadd.f32 %v1110, %v1221
    %v1224 = vtanh.pop %v1223
    %v1225 = vmul.f32 %v1224, 0.5
    %v1226 = vadd.f32 %v1225, 0.5
    %v1228 = vrot.slane %v1224, 1
    %v1230 = vmul.f32 %v1228, 0.5
    %v1231 = vadd.f32 %v1230, 0.5
    %v1232 = vrot.slane %v1224, 3
    %v1234 = vmul.f32 %v1232, 0.5
    %v1235 = vadd.f32 %v1234, 0.5
    %v1236 = vmul.f32 %v1231, %v1106
    %v1237 = vrot.slane %v1224, 2
    %v1239 = vmul.f32 %v1226, %v1237
    %v1240 = vadd.f32 %v1236, %v1239
    %v1241 = vtanh.pop %v1240
    %v1242 = vmul.f32 %v1235, %v1241
    %s1243 = scalar_lea.vmem [#allocation2], 7
    %v1244 = vld [vmem:[%s1243] ss:$8 sm:$0xf]
    %v1245 = vpack.c.bf16 %v1242, %v1242
    %1246 = vmatprep.subr.bf16.mxu0 %v245
    %1247 = vmatpush1.bf16.msra.mxu0 %v244
    %1248 = vmatprep.subr.bf16.mxu0 %v249
    %1249 = vmatpush1.bf16.msra.mxu0 %v248
    %1250 = vmatprep.subr.bf16.mxu0 %v253
    %1251 = vmatpush1.bf16.msra.mxu0 %v252
    %1252 = vmatprep.subr.bf16.mxu0 %v257
    %1253 = vmatpush1.bf16.msra.mxu0 %v256
    %1254 = vmatprep.subr.bf16.mxu0 %v261
    %1255 = vmatpush1.bf16.msra.mxu0 %v260
    %1256 = vmatprep.subr.bf16.mxu0 %v265
    %1257 = vmatpush1.bf16.msra.mxu0 %v264
    %1258 = vmatprep.subr.bf16.mxu0 %v269
    %1259 = vmatpush1.bf16.msra.mxu0 %v268
    %1260 = vmatprep.subr.bf16.mxu0 %v273
    %1261 = vmatpush1.bf16.msra.mxu0 %v272
    %1262 = vmatprep.subr.bf16.mxu0 0
    %1263 = vmatpush1.bf16.msra.mxu0 0
    %1264 = vmatprep.subr.bf16.mxu0 0
    %1265 = vmatpush1.bf16.msra.mxu0 0
    %1266 = vmatprep.subr.bf16.mxu0 0
    %1267 = vmatpush1.bf16.msra.mxu0 0
    %1268 = vmatprep.subr.bf16.mxu0 0
    %1269 = vmatpush1.bf16.msra.mxu0 0
    %1270 = vmatprep.subr.bf16.mxu0 0
    %1271 = vmatpush1.bf16.msra.mxu0 0
    %1272 = vmatprep.subr.bf16.mxu0 0
    %1273 = vmatpush1.bf16.msra.mxu0 0
    %1274 = vmatprep.subr.bf16.mxu0 0
    %1275 = vmatpush1.bf16.msra.mxu0 0
    %1276 = vmatprep.subr.bf16.mxu0 0
    %1277 = vmatpush1.bf16.msra.mxu0 0
    %1278 = vmatprep.mubr.bf16.mxu0 0
    %1279 = vmatmul.mubr.bf16.gmra.mrb[0].mxu0 %v1245
    %v1280 = vpop.f32.mrb[0].mxu0
    %v1281 = vadd.f32 0.0, %v1280
    %v1282 = vpop.f32.mrb[0].mxu0
    %v1283 = vadd.f32 0.0, %v1282
    %v1284 = vpop.f32.mrb[0].mxu0
    %v1285 = vpop.f32.mrb[0].mxu0
    %1286 = vdwg.mxu0
    %1287 = vmatprep.subr.bf16.mxu0 %v247
    %1288 = vmatpush1.bf16.msra.mxu0 %v246
    %1289 = vmatprep.subr.bf16.mxu0 %v251
    %1290 = vmatpush1.bf16.msra.mxu0 %v250
    %1291 = vmatprep.subr.bf16.mxu0 %v255
    %1292 = vmatpush1.bf16.msra.mxu0 %v254
    %1293 = vmatprep.subr.bf16.mxu0 %v259
    %1294 = vmatpush1.bf16.msra.mxu0 %v258
    %1295 = vmatprep.subr.bf16.mxu0 %v263
    %1296 = vmatpush1.bf16.msra.mxu0 %v262
    %1297 = vmatprep.subr.bf16.mxu0 %v267
    %1298 = vmatpush1.bf16.msra.mxu0 %v266
    %1299 = vmatprep.subr.bf16.mxu0 %v271
    %1300 = vmatpush1.bf16.msra.mxu0 %v270
    %1301 = vmatprep.subr.bf16.mxu0 %v275
    %1302 = vmatpush1.bf16.msra.mxu0 %v274
    %1303 = vmatprep.subr.bf16.mxu0 0
    %1304 = vmatpush1.bf16.msra.mxu0 0
    %1305 = vmatprep.subr.bf16.mxu0 0
    %1306 = vmatpush1.bf16.msra.mxu0 0
    %1307 = vmatprep.subr.bf16.mxu0 0
    %1308 = vmatpush1.bf16.msra.mxu0 0
    %1309 = vmatprep.subr.bf16.mxu0 0
    %1310 = vmatpush1.bf16.msra.mxu0 0
    %1311 = vmatprep.subr.bf16.mxu0 0
    %1312 = vmatpush1.bf16.msra.mxu0 0
    %1313 = vmatprep.subr.bf16.mxu0 0
    %1314 = vmatpush1.bf16.msra.mxu0 0
    %1315 = vmatprep.subr.bf16.mxu0 0
    %1316 = vmatpush1.bf16.msra.mxu0 0
    %1317 = vmatprep.subr.bf16.mxu0 0
    %1318 = vmatpush1.bf16.msra.mxu0 0
    %1319 = vmatprep.mubr.bf16.mxu0 0
    %1320 = vmatmul.mubr.bf16.gmra.mrb[0].mxu0 %v1245
    %v1321 = vpop.f32.mrb[0].mxu0
    %v1322 = vadd.f32 0.0, %v1321
    %v1323 = vpop.f32.mrb[0].mxu0
    %v1324 = vadd.f32 0.0, %v1323
    %v1325 = vpop.f32.mrb[0].mxu0
    %v1326 = vpop.f32.mrb[0].mxu0
    %1327 = vdwg.mxu0
    %v1332 = vcombine.low %v1281, %v1283
    %v1333 = vcombine.low %v1322, %v1324
    %v1335 = vunpack.c.l.s4 1966171168
    %v1336 = vunpack.c.0.s8 %v1335
    %v1337 = vlaneseq
    %v1338 = vshrl.u32 %v1337, 7
    %v1339 = vsub.s32 %v1336, %v1338
    %v1340 = vrot.slane %v1332, %v1339
    %v1342 = vunpack.c.l.s4 1966171168
    %v1343 = vunpack.c.0.s8 %v1342
    %v1344 = vlaneseq
    %v1345 = vshrl.u32 %v1344, 7
    %v1346 = vsub.s32 %v1343, %v1345
    %v1347 = vrot.slane %v1333, %v1346
    %v1348 = vcombine.low %v1340, %v1347
    %v1350 = vunpack.c.l.s4 1966171168
    %v1351 = vunpack.c.0.s8 %v1350
    %v1352 = vlaneseq
    %v1353 = vshrl.u32 %v1352, 7
    %v1354 = vsub.s32 %v1351, %v1353
    %v1355 = vrot.slane %v1348, %v1354
    %v1357 = vadd.f32 %v1244, %v1355
    %v1358 = vtanh.pop %v1357
    %v1359 = vmul.f32 %v1358, 0.5
    %v1360 = vadd.f32 %v1359, 0.5
    %v1362 = vrot.slane %v1358, 1
    %v1364 = vmul.f32 %v1362, 0.5
    %v1365 = vadd.f32 %v1364, 0.5
    %v1366 = vrot.slane %v1358, 3
    %v1368 = vmul.f32 %v1366, 0.5
    %v1369 = vadd.f32 %v1368, 0.5
    %v1370 = vmul.f32 %v1365, %v1240
    %v1371 = vrot.slane %v1358, 2
    %v1373 = vmul.f32 %v1360, %v1371
    %v1374 = vadd.f32 %v1370, %v1373
    %v1375 = vtanh.pop %v1374
    %v1376 = vmul.f32 %v1369, %v1375
    %1377 = vst [vmem:[%s9] sm:$0x1] %v1376
    %1378 = vst [vmem:[%s10] sm:$0x1] %v1374
    %v1379 = vld [vmem:[%s4] sm:$0x1]
    %v1380 = vmul.f32 %v1376, %v1379
    %vm1381 = vcmask 1040384
    %v1382 = vsel %vm1381, %v1380, 0.0
    %1383 = vadd.xlane.f32.xlu0 %v1382
    %v1384 = vpop.xlane.xlu0 %1383
    %v1385 = vld [vmem:[#allocation3] sm:$0x1]
    %v1386 = vadd.f32 %v1384, %v1385
    %vm1387 = vcmask 0
    %1388 = vst.msk [vmem:[#allocation7] sm:$0x1] %vm1387, %v1386
    // Predicated region
    $region38: #{lstm_forward.1} parent=1 // pred_check
      _
    $region39: #{lstm_forward.1} parent=1 // pred_check_branch
      %1390 = sbr.rel (0) target = $region41
    $region40: #{lstm_forward.1} parent=1 // pred_region
      %s1392 = ssub.s32 16, 16
      %1393 = vsyncadd [#allocation6], %s1392
      %s1395 = sshll.u32 [#allocation7], 4
      %s1396 = int_to_ptr.vmem [resolvable:$true] %s1395
      %1398 = dma.vmem_to_hbm [thread:$0]  %s1396, 16, %s8, [#allocation6]
    $region41: #{lstm_forward.1} parent=1 // pred_fallthru
      _
    // Predicated region
    $region42: #{lstm_forward.1} parent=1 // pred_check
      _
    $region43: #{lstm_forward.1} parent=1 // pred_check_branch
      %1400 = sbr.rel (0) target = $region45
    $region44: #{lstm_forward.1} parent=1 // pred_region
      _
    $region45: #{lstm_forward.1} parent=1 // pred_fallthru
      _
    // Predicated region
    $region46: #{lstm_forward.1} parent=1 // pred_check
      _
    $region47: #{lstm_forward.1} parent=1 // pred_check_branch
      %1402 = sbr.rel (0) target = $region49
    $region48: #{lstm_forward.1} parent=1 // pred_region
      _
    $region49: #{lstm_forward.1} parent=1 // pred_fallthru
      _
    // Predicated region
    $region50: #{lstm_forward.1} parent=1 // pred_check
      _
    $region51: #{lstm_forward.1} parent=1 // pred_check_branch
      %1404 = sbr.rel (0) target = $region53
    $region52: #{lstm_forward.1} parent=1 // pred_region
      %1405 = dma.done [#allocation6], 16
    $region53: #{lstm_forward.1} parent=1 // pred_fallthru
      _
    // Predicated region
    $region54: #{lstm_forward.1} parent=1 // pred_check
      _
    $region55: #{lstm_forward.1} parent=1 // pred_check_branch
      %1407 = sbr.rel (0) target = $region57
    $region56: #{lstm_forward.1} parent=1 // pred_region
      _
    $region57: #{lstm_forward.1} parent=1 // pred_fallthru
      _
    // Predicated region
    $region58: #{lstm_forward.1} parent=1 // pred_check
      _
    $region59: #{lstm_forward.1} parent=1 // pred_check_branch
      %1409 = sbr.rel (0) target = $region61
    $region60: #{lstm_forward.1} parent=1 // pred_region
      _
    $region61: #{lstm_forward.1} parent=1 // pred_fallthru
      _
    %1410 = vsyncpa [#allocation5], 1
    %1411 = vsyncpa [#allocation6], 1

</llo_original>
